<compile_context>
chip_gen: v7x
topology: tpu7x:2x2x1
jax: 0.10.0
libtpu: 0.0.40
codegen_flags: <defaults>
</compile_context>

<pallas_src>
from functools import partial

import jax
import jax.numpy as jnp
from jax.experimental import pallas as pl
from jax.experimental.pallas import tpu as pltpu


def mlp_kernel(x_ref, w1_ref, b1_ref, w2_ref, b2_ref, o_ref):
    # Cast x to the matmul dtype in-kernel (no-op for f32, cheap VPU op for bf16).
    x = x_ref[...].astype(w1_ref.dtype)
    # h = relu(x @ W1 + b1); accumulate in f32 on the MXU, epilogue in f32.
    h = jnp.dot(x, w1_ref[...], preferred_element_type=jnp.float32)
    h = jnp.maximum(h + b1_ref[...], 0.0)          # b1 (1, H_pad) broadcasts over TB
    # out = h @ W2 + b2  (cast h back to the matmul dtype for the second MXU pass).
    out = jnp.dot(h.astype(w2_ref.dtype), w2_ref[...],
                  preferred_element_type=jnp.float32)
    o_ref[...] = (out + b2_ref[...]).astype(o_ref.dtype)


def _round_up(n, m):
    return ((n + m - 1) // m) * m


def prepare_params(w1, b1, w2, b2, *, use_bf16=True):
    """Pad / cast the Linear parameters ONCE (call at init time, not per step).

    Expects weights already transposed vs. PyTorch: w1 (in, hidden), w2
    (hidden, num_classes).  Hidden and num_classes are zero-padded to
    multiples of 128 (exact: relu(0 + 0) = 0, padded output cols sliced off);
    the K (input) dim is NOT padded.
    """
    K, H = w1.shape
    N = w2.shape[1]
    H_pad = _round_up(H, 128)
    N_pad = _round_up(N, 128)
    mm_dtype = jnp.bfloat16 if use_bf16 else jnp.float32

    w1p = jnp.zeros((K, H_pad), mm_dtype).at[:, :H].set(w1.astype(mm_dtype))
    b1p = jnp.zeros((1, H_pad), jnp.float32).at[0, :H].set(b1.astype(jnp.float32))
    w2p = jnp.zeros((H_pad, N_pad), mm_dtype).at[:H, :N].set(w2.astype(mm_dtype))
    b2p = jnp.zeros((1, N_pad), jnp.float32).at[0, :N].set(b2.astype(jnp.float32))
    return w1p, b1p, w2p, b2p


def neural_net_forward(x, w1p, b1p, w2p, b2p, num_classes, *, tile_b=None):
    """x: (B, input_size) f32; padded params from prepare_params()."""
    B, K = x.shape
    H_pad = w1p.shape[1]
    N_pad = w2p.shape[1]
    w_itemsize = jnp.dtype(w1p.dtype).itemsize
    x_itemsize = jnp.dtype(x.dtype).itemsize

    # Batch tile: big enough to amortize per-step overhead, multiple of 8,
    # collapse to a single grid step for small batches.
    if tile_b is None:
        tile_b = min(512, _round_up(B, 8))
    tile_b = _round_up(tile_b, 8)
    B_pad = _round_up(B, tile_b)
    num_tiles = B_pad // tile_b

    xp = x if B_pad == B else jnp.pad(x, ((0, B_pad - B), (0, 0)))

    # Actual VMEM working set (Pallas double-buffers each operand) + slack,
    # capped well below v7x's 64 MiB physical VMEM.
    vmem_bytes = 2 * (tile_b * K * x_itemsize
                      + K * H_pad * w_itemsize + H_pad * 4
                      + H_pad * N_pad * w_itemsize + N_pad * 4
                      + tile_b * N_pad * 4)
    vmem_limit = int(min(vmem_bytes + (8 << 20), 48 << 20))

    # Only shard the batch axis across TensorCores when there is enough work
    # per core; otherwise the resident weights would be DMA'd twice.
    dim_sem = ("parallel",) if num_tiles >= 8 else ("arbitrary",)

    flops = 2 * B_pad * K * H_pad + 2 * B_pad * H_pad * N_pad
    bytes_accessed = (B_pad * K * x_itemsize
                      + (K * H_pad + H_pad * N_pad) * w_itemsize
                      + (H_pad + N_pad) * 4
                      + B_pad * N_pad * 4)

    out_padded = pl.pallas_call(
        mlp_kernel,
        out_shape=jax.ShapeDtypeStruct((B_pad, N_pad), jnp.float32),
        grid_spec=pl.GridSpec(
            grid=(num_tiles,),
            in_specs=[
                pl.BlockSpec((tile_b, K), lambda i: (i, 0)),     # x tile (pipelined)
                pl.BlockSpec((K, H_pad), lambda i: (0, 0)),      # W1 (resident)
                pl.BlockSpec((1, H_pad), lambda i: (0, 0)),      # b1 (resident)
                pl.BlockSpec((H_pad, N_pad), lambda i: (0, 0)),  # W2 (resident)
                pl.BlockSpec((1, N_pad), lambda i: (0, 0)),      # b2 (resident)
            ],
            out_specs=pl.BlockSpec((tile_b, N_pad), lambda i: (i, 0)),
        ),
        compiler_params=pltpu.CompilerParams(
            dimension_semantics=dim_sem,
            vmem_limit_bytes=vmem_limit,
        ),
        cost_estimate=pl.CostEstimate(
            flops=flops, transcendentals=0, bytes_accessed=bytes_accessed),
    )(xp, w1p, b1p, w2p, b2p)

    # TODO(synk): if K*H_pad*itemsize (+ tiles) exceeds ~40-48 MiB on v7x
    # (64 MiB VMEM) or ~100 MiB on v5e/v6e, first switch weights to bf16, then
    # add a K grid axis with a (tile_b, H_pad) f32 accumulator scratch and
    # pl.when init/finalize (P3), marking that axis "arbitrary".
    return out_padded[:B, :num_classes]


if __name__ == "__main__":
    # Shapes consistent with the module: MNIST-style input, hidden=500, 10 classes.
    batch = 128
    input_size = 784
    hidden_size = 500
    num_classes = 10

    key = jax.random.PRNGKey(0)
    kx, kw1, kb1, kw2, kb2 = jax.random.split(key, 5)

    x = jax.random.normal(kx, (batch, input_size), dtype=jnp.float32)

    # Deterministic init mimicking nn.Linear's uniform(-1/sqrt(fan_in), 1/sqrt(fan_in)).
    lim1 = 1.0 / (input_size ** 0.5)
    w1 = jax.random.uniform(kw1, (input_size, hidden_size), jnp.float32, -lim1, lim1)
    b1 = jax.random.uniform(kb1, (hidden_size,), jnp.float32, -lim1, lim1)
    lim2 = 1.0 / (hidden_size ** 0.5)
    w2 = jax.random.uniform(kw2, (hidden_size, num_classes), jnp.float32, -lim2, lim2)
    b2 = jax.random.uniform(kb2, (num_classes,), jnp.float32, -lim2, lim2)

    ref = jnp.maximum(x @ w1 + b1, 0.0) @ w2 + b2

    fwd = jax.jit(partial(neural_net_forward, num_classes=num_classes))

    # Default bf16 path (v5e/v6e/v7x fast path): bf16 MXU operands, f32 accumulate.
    params_bf16 = prepare_params(w1, b1, w2, b2, use_bf16=True)
    out_bf16 = fwd(x, *params_bf16)
    jax.block_until_ready(out_bf16)
    assert out_bf16.shape == (batch, num_classes)
    assert jnp.allclose(out_bf16, ref, atol=1e-1, rtol=1e-1), float(
        jnp.max(jnp.abs(out_bf16 - ref)))

    # f32 path: tight correctness check.
    params_f32 = prepare_params(w1, b1, w2, b2, use_bf16=False)
    out_f32 = fwd(x, *params_f32)
    jax.block_until_ready(out_f32)
    assert out_f32.shape == (batch, num_classes)
    assert jnp.allclose(out_f32, ref, atol=2e-4, rtol=2e-4), float(
        jnp.max(jnp.abs(out_f32 - ref)))

    print("KERNEL_OK")
</pallas_src>

<mosaic_0001>
module attributes {stable_mosaic.version = 11 : i64} {
  func.func @mlp_kernel(%arg0: i32, %arg1: memref<128x784xf32, #tpu.memory_space<vmem>>, %arg2: memref<784x512xbf16, #tpu.memory_space<vmem>>, %arg3: memref<1x512xf32, #tpu.memory_space<vmem>>, %arg4: memref<512x128xbf16, #tpu.memory_space<vmem>>, %arg5: memref<1x128xf32, #tpu.memory_space<vmem>>, %arg6: memref<128x128xf32, #tpu.memory_space<vmem>>) attributes {dimension_semantics = [#tpu.dimension_semantics<arbitrary>], iteration_bounds = array<i64: 1>, scalar_prefetch = 0 : i64, scratch_operands = 0 : i64, tpu.core_type = #tpu.core_type<tc>, window_params = [{transform_indices = @transform_0, window_bounds = array<i64: 128, 784>}, {pipeline_mode = #tpu.pipeline_mode<synchronous>, transform_indices = @transform_1, window_bounds = array<i64: 784, 512>}, {pipeline_mode = #tpu.pipeline_mode<synchronous>, transform_indices = @transform_2, window_bounds = array<i64: 1, 512>}, {pipeline_mode = #tpu.pipeline_mode<synchronous>, transform_indices = @transform_3, window_bounds = array<i64: 512, 128>}, {pipeline_mode = #tpu.pipeline_mode<synchronous>, transform_indices = @transform_4, window_bounds = array<i64: 1, 128>}, {transform_indices = @transform_5, window_bounds = array<i64: 128, 128>}]} {
    %c0 = arith.constant 0 : index
    %c0_0 = arith.constant 0 : index
    %0 = vector.load %arg1[%c0, %c0_0] : memref<128x784xf32, #tpu.memory_space<vmem>>, vector<128x784xf32>
    %1 = arith.truncf %0 : vector<128x784xf32> to vector<128x784xbf16>
    %c0_1 = arith.constant 0 : index
    %c0_2 = arith.constant 0 : index
    %2 = vector.load %arg2[%c0_1, %c0_2] : memref<784x512xbf16, #tpu.memory_space<vmem>>, vector<784x512xbf16>
    %cst = arith.constant dense<0.000000e+00> : vector<128x512xf32>
    %3 = tpu.matmul %1, %2, %cst {dimension_numbers = #tpu.dot_dimension_numbers<[1], [0], [0], [1], [0, 0, 1, 1], [], []>} : vector<128x784xbf16>, vector<784x512xbf16>, vector<128x512xf32> -> vector<128x512xf32>
    %c0_3 = arith.constant 0 : index
    %c0_4 = arith.constant 0 : index
    %4 = vector.load %arg3[%c0_3, %c0_4] : memref<1x512xf32, #tpu.memory_space<vmem>>, vector<1x512xf32>
    %5 = vector.broadcast %4 : vector<1x512xf32> to vector<128x512xf32>
    %6 = arith.addf %3, %5 : vector<128x512xf32>
    %cst_5 = arith.constant 0.000000e+00 : f32
    %7 = vector.broadcast %cst_5 : f32 to vector<128x512xf32>
    %8 = arith.maximumf %6, %7 : vector<128x512xf32>
    %9 = arith.truncf %8 : vector<128x512xf32> to vector<128x512xbf16>
    %c0_6 = arith.constant 0 : index
    %c0_7 = arith.constant 0 : index
    %10 = vector.load %arg4[%c0_6, %c0_7] : memref<512x128xbf16, #tpu.memory_space<vmem>>, vector<512x128xbf16>
    %cst_8 = arith.constant dense<0.000000e+00> : vector<128x128xf32>
    %11 = tpu.matmul %9, %10, %cst_8 {dimension_numbers = #tpu.dot_dimension_numbers<[1], [0], [0], [1], [0, 0, 1, 1], [], []>} : vector<128x512xbf16>, vector<512x128xbf16>, vector<128x128xf32> -> vector<128x128xf32>
    %c0_9 = arith.constant 0 : index
    %c0_10 = arith.constant 0 : index
    %12 = vector.load %arg5[%c0_9, %c0_10] : memref<1x128xf32, #tpu.memory_space<vmem>>, vector<1x128xf32>
    %13 = vector.broadcast %12 : vector<1x128xf32> to vector<128x128xf32>
    %14 = arith.addf %11, %13 : vector<128x128xf32>
    %c0_11 = arith.constant 0 : index
    %c0_12 = arith.constant 0 : index
    %15 = vector.load %arg6[%c0_11, %c0_12] : memref<128x128xf32, #tpu.memory_space<vmem>>, vector<128x128xf32>
    tpu.vector_store %arg6[%c0_11, %c0_12], %14 {strides = array<i32>} : memref<128x128xf32, #tpu.memory_space<vmem>>, vector<128x128xf32>,
    return
  }
  func.func @transform_0(%arg0: i32) -> (i32, i32) {
    %c0_i32 = arith.constant 0 : i32
    %c0_i32_0 = arith.constant 0 : i32
    return %arg0, %c0_i32 : i32, i32
  }
  func.func @transform_1(%arg0: i32) -> (i32, i32) {
    %c0_i32 = arith.constant 0 : i32
    %c0_i32_0 = arith.constant 0 : i32
    %c0_i32_1 = arith.constant 0 : i32
    return %c0_i32, %c0_i32_0 : i32, i32
  }
  func.func @transform_2(%arg0: i32) -> (i32, i32) {
    %c0_i32 = arith.constant 0 : i32
    %c0_i32_0 = arith.constant 0 : i32
    %c0_i32_1 = arith.constant 0 : i32
    return %c0_i32, %c0_i32_0 : i32, i32
  }
  func.func @transform_3(%arg0: i32) -> (i32, i32) {
    %c0_i32 = arith.constant 0 : i32
    %c0_i32_0 = arith.constant 0 : i32
    %c0_i32_1 = arith.constant 0 : i32
    return %c0_i32, %c0_i32_0 : i32, i32
  }
  func.func @transform_4(%arg0: i32) -> (i32, i32) {
    %c0_i32 = arith.constant 0 : i32
    %c0_i32_0 = arith.constant 0 : i32
    %c0_i32_1 = arith.constant 0 : i32
    return %c0_i32, %c0_i32_0 : i32, i32
  }
  func.func @transform_5(%arg0: i32) -> (i32, i32) {
    %c0_i32 = arith.constant 0 : i32
    %c0_i32_0 = arith.constant 0 : i32
    return %arg0, %c0_i32 : i32, i32
  }
}

</mosaic_0001>

<llo_original>
// kernel: neural_net_forward.1
$region0: #{neural_net_forward.1}
  #allocation0 [shape = 'u32[]', space=smem, size = 0x4, offset = 0x4, fixed_abs, tag = 'smem constant byte address 0x4 - core index']
  #allocation1 [shape = 'u32[144,128]{1,0:T(1,128)}', space=vmem, size = 0x12000, scoped, tag = 'internal scratch']
  %s0 = inlined_call_operand.vmem [shape: f32[128,784], index: 0, kind: input, shape index: {}]
  %s1 = inlined_call_operand.vmem [shape: bf16[784,512], index: 1, kind: input, shape index: {}]
  %s2 = inlined_call_operand.vmem [shape: f32[1,512], index: 2, kind: input, shape index: {}]
  %s3 = inlined_call_operand.hbm [shape: bf16[512,128], index: 3, kind: input, shape index: {}]
  %s4 = inlined_call_operand.vmem [shape: f32[1,128], index: 4, kind: input, shape index: {}]
  %s5 = inlined_call_operand.vmem [shape: f32[128,128], index: 5, kind: output, shape index: {}]
  %s6 = sld [smem:[#allocation0]]
  $region34: #{neural_net_forward.1} parent=0
    _
  %s8 = ssub.s32 1, %s6
  %s9 = scalar_select 0, %s8, %s6
  $region1: #{neural_net_forward.1} parent=0
    #allocation2 [shape = 'u8[131072]{0}', space=vmem, size = 0x20000, scoped, tag = 'input window, operand 3, single buffered']
    #allocation3 [shape = 's32[1]{0}', space=sflag, size = 0x4, scoped, tag = 'scoped memory for neural_net_forward.1']
    %10 = vsyncpa [#allocation3], 0
    // Predicated region
    $region2: #{neural_net_forward.1} parent=1 // pred_check
      _
    $region3: #{neural_net_forward.1} parent=1 // pred_check_branch
      %12 = sbr.rel (0) target = $region5
    $region4: #{neural_net_forward.1} parent=1 // pred_region
      _
    $region5: #{neural_net_forward.1} parent=1 // pred_fallthru
      _
    // Predicated region
    $region6: #{neural_net_forward.1} parent=1 // pred_check
      _
    $region7: #{neural_net_forward.1} parent=1 // pred_check_branch
      %14 = sbr.rel (0) target = $region9
    $region8: #{neural_net_forward.1} parent=1 // pred_region
      _
    $region9: #{neural_net_forward.1} parent=1 // pred_fallthru
      _
    // Predicated region
    $region10: #{neural_net_forward.1} parent=1 // pred_check
      _
    $region11: #{neural_net_forward.1} parent=1 // pred_check_branch
      %16 = sbr.rel (0) target = $region13
    $region12: #{neural_net_forward.1} parent=1 // pred_region
      _
    $region13: #{neural_net_forward.1} parent=1 // pred_fallthru
      _
    // Predicated region
    $region14: #{neural_net_forward.1} parent=1 // pred_check
      _
    $region15: #{neural_net_forward.1} parent=1 // pred_check_branch
      %18 = sbr.rel (0) target = $region17
    $region16: #{neural_net_forward.1} parent=1 // pred_region
      %s20 = ssub.s32 4096, 4096
      %21 = vsyncadd [#allocation3], %s20
      %s22 = sshll.u32 [#allocation2], 4
      %s23 = int_to_ptr.vmem [resolvable:$true] %s22
      %28 = dma.hbm_to_vmem [thread:$0]  %s3, 4096, %s23, [#allocation3], 64, 64, 4
    $region17: #{neural_net_forward.1} parent=1 // pred_fallthru
      _
    // Predicated region
    $region18: #{neural_net_forward.1} parent=1 // pred_check
      _
    $region19: #{neural_net_forward.1} parent=1 // pred_check_branch
      %30 = sbr.rel (0) target = $region21
    $region20: #{neural_net_forward.1} parent=1 // pred_region
      _
    $region21: #{neural_net_forward.1} parent=1 // pred_fallthru
      _
    // Predicated region
    $region22: #{neural_net_forward.1} parent=1 // pred_check
      _
    $region23: #{neural_net_forward.1} parent=1 // pred_check_branch
      %32 = sbr.rel (0) target = $region25
    $region24: #{neural_net_forward.1} parent=1 // pred_region
      %33 = dma.done [#allocation3], 4096
    $region25: #{neural_net_forward.1} parent=1 // pred_fallthru
      _
    %v35 = vld [vmem:[%s0] sm:$0xff]
    %v36 = vld [vmem:[%s0 + $0x8] sm:$0xff]
    %v37 = vld [vmem:[%s0 + $0x10] sm:$0xff]
    %v38 = vld [vmem:[%s0 + $0x18] sm:$0xff]
    %v39 = vld [vmem:[%s0 + $0x20] sm:$0xff]
    %v40 = vld [vmem:[%s0 + $0x28] sm:$0xff]
    %v41 = vld [vmem:[%s0 + $0x30] sm:$0xff]
    %v42 = vld [vmem:[%s0 + $0x38] sm:$0xff]
    %v43 = vld [vmem:[%s0 + $0x40] sm:$0xff]
    %v44 = vld [vmem:[%s0 + $0x48] sm:$0xff]
    %v45 = vld [vmem:[%s0 + $0x50] sm:$0xff]
    %v46 = vld [vmem:[%s0 + $0x58] sm:$0xff]
    %v47 = vld [vmem:[%s0 + $0x60] sm:$0xff]
    %v48 = vld [vmem:[%s0 + $0x68] sm:$0xff]
    %v49 = vld [vmem:[%s0 + $0x70] sm:$0xff]
    %v50 = vld [vmem:[%s0 + $0x78] sm:$0xff]
    %v51 = vld [vmem:[%s0 + $0x80] sm:$0xff]
    %v52 = vld [vmem:[%s0 + $0x88] sm:$0xff]
    %v53 = vld [vmem:[%s0 + $0x90] sm:$0xff]
    %v54 = vld [vmem:[%s0 + $0x98] sm:$0xff]
    %v55 = vld [vmem:[%s0 + $0xa0] sm:$0xff]
    %v56 = vld [vmem:[%s0 + $0xa8] sm:$0xff]
    %v57 = vld [vmem:[%s0 + $0xb0] sm:$0xff]
    %v58 = vld [vmem:[%s0 + $0xb8] sm:$0xff]
    %v59 = vld [vmem:[%s0 + $0xc0] sm:$0xff]
    %v60 = vld [vmem:[%s0 + $0xc8] sm:$0xff]
    %v61 = vld [vmem:[%s0 + $0xd0] sm:$0xff]
    %v62 = vld [vmem:[%s0 + $0xd8] sm:$0xff]
    %v63 = vld [vmem:[%s0 + $0xe0] sm:$0xff]
    %v64 = vld [vmem:[%s0 + $0xe8] sm:$0xff]
    %v65 = vld [vmem:[%s0 + $0xf0] sm:$0xff]
    %v66 = vld [vmem:[%s0 + $0xf8] sm:$0xff]
    %v67 = vld [vmem:[%s0 + $0x100] sm:$0xff]
    %v68 = vld [vmem:[%s0 + $0x108] sm:$0xff]
    %v69 = vld [vmem:[%s0 + $0x110] sm:$0xff]
    %v70 = vld [vmem:[%s0 + $0x118] sm:$0xff]
    %v71 = vld [vmem:[%s0 + $0x120] sm:$0xff]
    %v72 = vld [vmem:[%s0 + $0x128] sm:$0xff]
    %v73 = vld [vmem:[%s0 + $0x130] sm:$0xff]
    %v74 = vld [vmem:[%s0 + $0x138] sm:$0xff]
    %v75 = vld [vmem:[%s0 + $0x140] sm:$0xff]
    %v76 = vld [vmem:[%s0 + $0x148] sm:$0xff]
    %v77 = vld [vmem:[%s0 + $0x150] sm:$0xff]
    %v78 = vld [vmem:[%s0 + $0x158] sm:$0xff]
    %v79 = vld [vmem:[%s0 + $0x160] sm:$0xff]
    %v80 = vld [vmem:[%s0 + $0x168] sm:$0xff]
    %v81 = vld [vmem:[%s0 + $0x170] sm:$0xff]
    %v82 = vld [vmem:[%s0 + $0x178] sm:$0xff]
    %v83 = vld [vmem:[%s0 + $0x180] sm:$0xff]
    %v84 = vld [vmem:[%s0 + $0x188] sm:$0xff]
    %v85 = vld [vmem:[%s0 + $0x190] sm:$0xff]
    %v86 = vld [vmem:[%s0 + $0x198] sm:$0xff]
    %v87 = vld [vmem:[%s0 + $0x1a0] sm:$0xff]
    %v88 = vld [vmem:[%s0 + $0x1a8] sm:$0xff]
    %v89 = vld [vmem:[%s0 + $0x1b0] sm:$0xff]
    %v90 = vld [vmem:[%s0 + $0x1b8] sm:$0xff]
    %v91 = vld [vmem:[%s0 + $0x1c0] sm:$0xff]
    %v92 = vld [vmem:[%s0 + $0x1c8] sm:$0xff]
    %v93 = vld [vmem:[%s0 + $0x1d0] sm:$0xff]
    %v94 = vld [vmem:[%s0 + $0x1d8] sm:$0xff]
    %v95 = vld [vmem:[%s0 + $0x1e0] sm:$0xff]
    %v96 = vld [vmem:[%s0 + $0x1e8] sm:$0xff]
    %v97 = vld [vmem:[%s0 + $0x1f0] sm:$0xff]
    %v98 = vld [vmem:[%s0 + $0x1f8] sm:$0xff]
    %v99 = vld [vmem:[%s0 + $0x200] sm:$0xff]
    %v100 = vld [vmem:[%s0 + $0x208] sm:$0xff]
    %v101 = vld [vmem:[%s0 + $0x210] sm:$0xff]
    %v102 = vld [vmem:[%s0 + $0x218] sm:$0xff]
    %v103 = vld [vmem:[%s0 + $0x220] sm:$0xff]
    %v104 = vld [vmem:[%s0 + $0x228] sm:$0xff]
    %v105 = vld [vmem:[%s0 + $0x230] sm:$0xff]
    %v106 = vld [vmem:[%s0 + $0x238] sm:$0xff]
    %v107 = vld [vmem:[%s0 + $0x240] sm:$0xff]
    %v108 = vld [vmem:[%s0 + $0x248] sm:$0xff]
    %v109 = vld [vmem:[%s0 + $0x250] sm:$0xff]
    %v110 = vld [vmem:[%s0 + $0x258] sm:$0xff]
    %v111 = vld [vmem:[%s0 + $0x260] sm:$0xff]
    %v112 = vld [vmem:[%s0 + $0x268] sm:$0xff]
    %v113 = vld [vmem:[%s0 + $0x270] sm:$0xff]
    %v114 = vld [vmem:[%s0 + $0x278] sm:$0xff]
    %v115 = vld [vmem:[%s0 + $0x280] sm:$0xff]
    %v116 = vld [vmem:[%s0 + $0x288] sm:$0xff]
    %v117 = vld [vmem:[%s0 + $0x290] sm:$0xff]
    %v118 = vld [vmem:[%s0 + $0x298] sm:$0xff]
    %v119 = vld [vmem:[%s0 + $0x2a0] sm:$0xff]
    %v120 = vld [vmem:[%s0 + $0x2a8] sm:$0xff]
    %v121 = vld [vmem:[%s0 + $0x2b0] sm:$0xff]
    %v122 = vld [vmem:[%s0 + $0x2b8] sm:$0xff]
    %v123 = vld [vmem:[%s0 + $0x2c0] sm:$0xff]
    %v124 = vld [vmem:[%s0 + $0x2c8] sm:$0xff]
    %v125 = vld [vmem:[%s0 + $0x2d0] sm:$0xff]
    %v126 = vld [vmem:[%s0 + $0x2d8] sm:$0xff]
    %v127 = vld [vmem:[%s0 + $0x2e0] sm:$0xff]
    %v128 = vld [vmem:[%s0 + $0x2e8] sm:$0xff]
    %v129 = vld [vmem:[%s0 + $0x2f0] sm:$0xff]
    %v130 = vld [vmem:[%s0 + $0x2f8] sm:$0xff]
    %v131 = vld [vmem:[%s0 + $0x300] sm:$0xff]
    %v132 = vld [vmem:[%s0 + $0x308] sm:$0xff]
    %v133 = vld [vmem:[%s0 + $0x310] sm:$0xff]
    %v134 = vld [vmem:[%s0 + $0x318] sm:$0xff]
    %v135 = vld [vmem:[%s0 + $0x320] sm:$0xff]
    %v136 = vld [vmem:[%s0 + $0x328] sm:$0xff]
    %v137 = vld [vmem:[%s0 + $0x330] sm:$0xff]
    %v138 = vld [vmem:[%s0 + $0x338] sm:$0xff]
    %v139 = vld [vmem:[%s0 + $0x340] sm:$0xff]
    %v140 = vld [vmem:[%s0 + $0x348] sm:$0xff]
    %v141 = vld [vmem:[%s0 + $0x350] sm:$0xff]
    %v142 = vld [vmem:[%s0 + $0x358] sm:$0xff]
    %v143 = vld [vmem:[%s0 + $0x360] sm:$0xff]
    %v144 = vld [vmem:[%s0 + $0x368] sm:$0xff]
    %v145 = vld [vmem:[%s0 + $0x370] sm:$0xff]
    %v146 = vld [vmem:[%s0 + $0x378] sm:$0xff]
    %v147 = vpack.c.bf16 %v42, %v35
    %v148 = vpack.c.bf16 %v43, %v36
    %v149 = vpack.c.bf16 %v44, %v37
    %v150 = vpack.c.bf16 %v45, %v38
    %v151 = vpack.c.bf16 %v46, %v39
    %v152 = vpack.c.bf16 %v47, %v40
    %v153 = vpack.c.bf16 %v48, %v41
    %v154 = vpack.c.bf16 %v56, %v49
    %v155 = vpack.c.bf16 %v57, %v50
    %v156 = vpack.c.bf16 %v58, %v51
    %v157 = vpack.c.bf16 %v59, %v52
    %v158 = vpack.c.bf16 %v60, %v53
    %v159 = vpack.c.bf16 %v61, %v54
    %v160 = vpack.c.bf16 %v62, %v55
    %v161 = vpack.c.bf16 %v70, %v63
    %v162 = vpack.c.bf16 %v71, %v64
    %v163 = vpack.c.bf16 %v72, %v65
    %v164 = vpack.c.bf16 %v73, %v66
    %v165 = vpack.c.bf16 %v74, %v67
    %v166 = vpack.c.bf16 %v75, %v68
    %v167 = vpack.c.bf16 %v76, %v69
    %v168 = vpack.c.bf16 %v84, %v77
    %v169 = vpack.c.bf16 %v85, %v78
    %v170 = vpack.c.bf16 %v86, %v79
    %v171 = vpack.c.bf16 %v87, %v80
    %v172 = vpack.c.bf16 %v88, %v81
    %v173 = vpack.c.bf16 %v89, %v82
    %v174 = vpack.c.bf16 %v90, %v83
    %v175 = vpack.c.bf16 %v98, %v91
    %v176 = vpack.c.bf16 %v99, %v92
    %v177 = vpack.c.bf16 %v100, %v93
    %v178 = vpack.c.bf16 %v101, %v94
    %v179 = vpack.c.bf16 %v102, %v95
    %v180 = vpack.c.bf16 %v103, %v96
    %v181 = vpack.c.bf16 %v104, %v97
    %v182 = vpack.c.bf16 %v112, %v105
    %v183 = vpack.c.bf16 %v113, %v106
    %v184 = vpack.c.bf16 %v114, %v107
    %v185 = vpack.c.bf16 %v115, %v108
    %v186 = vpack.c.bf16 %v116, %v109
    %v187 = vpack.c.bf16 %v117, %v110
    %v188 = vpack.c.bf16 %v118, %v111
    %v189 = vpack.c.bf16 %v126, %v119
    %v190 = vpack.c.bf16 %v127, %v120
    %v191 = vpack.c.bf16 %v128, %v121
    %v192 = vpack.c.bf16 %v129, %v122
    %v193 = vpack.c.bf16 %v130, %v123
    %v194 = vpack.c.bf16 %v131, %v124
    %v195 = vpack.c.bf16 %v132, %v125
    %v196 = vpack.c.bf16 %v140, %v133
    %v197 = vpack.c.bf16 %v141, %v134
    %v198 = vpack.c.bf16 %v142, %v135
    %v199 = vpack.c.bf16 %v143, %v136
    %v200 = vpack.c.bf16 %v144, %v137
    %v201 = vpack.c.bf16 %v145, %v138
    %v202 = vpack.c.bf16 %v146, %v139
    %v203 = vld [vmem:[%s1] sm:$0xff]
    %v204 = vld [vmem:[%s1 + $0x8] sm:$0xff]
    %v205 = vld [vmem:[%s1 + $0x10] sm:$0xff]
    %v206 = vld [vmem:[%s1 + $0x18] sm:$0xff]
    %v207 = vld [vmem:[%s1 + $0x20] sm:$0xff]
    %v208 = vld [vmem:[%s1 + $0x28] sm:$0xff]
    %v209 = vld [vmem:[%s1 + $0x30] sm:$0xff]
    %v210 = vld [vmem:[%s1 + $0x38] sm:$0xff]
    %v211 = vld [vmem:[%s1 + $0x40] sm:$0xff]
    %v212 = vld [vmem:[%s1 + $0x48] sm:$0xff]
    %v213 = vld [vmem:[%s1 + $0x50] sm:$0xff]
    %v214 = vld [vmem:[%s1 + $0x58] sm:$0xff]
    %v215 = vld [vmem:[%s1 + $0x60] sm:$0xff]
    %v216 = vld [vmem:[%s1 + $0x68] sm:$0xff]
    %v217 = vld [vmem:[%s1 + $0x70] sm:$0xff]
    %v218 = vld [vmem:[%s1 + $0x78] sm:$0xff]
    %v219 = vld [vmem:[%s1 + $0x80] sm:$0xff]
    %v220 = vld [vmem:[%s1 + $0x88] sm:$0xff]
    %v221 = vld [vmem:[%s1 + $0x90] sm:$0xff]
    %v222 = vld [vmem:[%s1 + $0x98] sm:$0xff]
    %v223 = vld [vmem:[%s1 + $0xa0] sm:$0xff]
    %v224 = vld [vmem:[%s1 + $0xa8] sm:$0xff]
    %v225 = vld [vmem:[%s1 + $0xb0] sm:$0xff]
    %v226 = vld [vmem:[%s1 + $0xb8] sm:$0xff]
    %v227 = vld [vmem:[%s1 + $0xc0] sm:$0xff]
    %v228 = vld [vmem:[%s1 + $0xc8] sm:$0xff]
    %v229 = vld [vmem:[%s1 + $0xd0] sm:$0xff]
    %v230 = vld [vmem:[%s1 + $0xd8] sm:$0xff]
    %v231 = vld [vmem:[%s1 + $0xe0] sm:$0xff]
    %v232 = vld [vmem:[%s1 + $0xe8] sm:$0xff]
    %v233 = vld [vmem:[%s1 + $0xf0] sm:$0xff]
    %v234 = vld [vmem:[%s1 + $0xf8] sm:$0xff]
    %v235 = vld [vmem:[%s1 + $0x100] sm:$0xff]
    %v236 = vld [vmem:[%s1 + $0x108] sm:$0xff]
    %v237 = vld [vmem:[%s1 + $0x110] sm:$0xff]
    %v238 = vld [vmem:[%s1 + $0x118] sm:$0xff]
    %v239 = vld [vmem:[%s1 + $0x120] sm:$0xff]
    %v240 = vld [vmem:[%s1 + $0x128] sm:$0xff]
    %v241 = vld [vmem:[%s1 + $0x130] sm:$0xff]
    %v242 = vld [vmem:[%s1 + $0x138] sm:$0xff]
    %v243 = vld [vmem:[%s1 + $0x140] sm:$0xff]
    %v244 = vld [vmem:[%s1 + $0x148] sm:$0xff]
    %v245 = vld [vmem:[%s1 + $0x150] sm:$0xff]
    %v246 = vld [vmem:[%s1 + $0x158] sm:$0xff]
    %v247 = vld [vmem:[%s1 + $0x160] sm:$0xff]
    %v248 = vld [vmem:[%s1 + $0x168] sm:$0xff]
    %v249 = vld [vmem:[%s1 + $0x170] sm:$0xff]
    %v250 = vld [vmem:[%s1 + $0x178] sm:$0xff]
    %v251 = vld [vmem:[%s1 + $0x180] sm:$0xff]
    %v252 = vld [vmem:[%s1 + $0x188] sm:$0xff]
    %v253 = vld [vmem:[%s1 + $0x190] sm:$0xff]
    %v254 = vld [vmem:[%s1 + $0x198] sm:$0xff]
    %v255 = vld [vmem:[%s1 + $0x1a0] sm:$0xff]
    %v256 = vld [vmem:[%s1 + $0x1a8] sm:$0xff]
    %v257 = vld [vmem:[%s1 + $0x1b0] sm:$0xff]
    %v258 = vld [vmem:[%s1 + $0x1b8] sm:$0xff]
    %v259 = vld [vmem:[%s1 + $0x1c0] sm:$0xff]
    %v260 = vld [vmem:[%s1 + $0x1c8] sm:$0xff]
    %v261 = vld [vmem:[%s1 + $0x1d0] sm:$0xff]
    %v262 = vld [vmem:[%s1 + $0x1d8] sm:$0xff]
    %v263 = vld [vmem:[%s1 + $0x1e0] sm:$0xff]
    %v264 = vld [vmem:[%s1 + $0x1e8] sm:$0xff]
    %v265 = vld [vmem:[%s1 + $0x1f0] sm:$0xff]
    %v266 = vld [vmem:[%s1 + $0x1f8] sm:$0xff]
    %v267 = vld [vmem:[%s1 + $0x200] sm:$0xff]
    %v268 = vld [vmem:[%s1 + $0x208] sm:$0xff]
    %v269 = vld [vmem:[%s1 + $0x210] sm:$0xff]
    %v270 = vld [vmem:[%s1 + $0x218] sm:$0xff]
    %v271 = vld [vmem:[%s1 + $0x220] sm:$0xff]
    %v272 = vld [vmem:[%s1 + $0x228] sm:$0xff]
    %v273 = vld [vmem:[%s1 + $0x230] sm:$0xff]
    %v274 = vld [vmem:[%s1 + $0x238] sm:$0xff]
    %v275 = vld [vmem:[%s1 + $0x240] sm:$0xff]
    %v276 = vld [vmem:[%s1 + $0x248] sm:$0xff]
    %v277 = vld [vmem:[%s1 + $0x250] sm:$0xff]
    %v278 = vld [vmem:[%s1 + $0x258] sm:$0xff]
    %v279 = vld [vmem:[%s1 + $0x260] sm:$0xff]
    %v280 = vld [vmem:[%s1 + $0x268] sm:$0xff]
    %v281 = vld [vmem:[%s1 + $0x270] sm:$0xff]
    %v282 = vld [vmem:[%s1 + $0x278] sm:$0xff]
    %v283 = vld [vmem:[%s1 + $0x280] sm:$0xff]
    %v284 = vld [vmem:[%s1 + $0x288] sm:$0xff]
    %v285 = vld [vmem:[%s1 + $0x290] sm:$0xff]
    %v286 = vld [vmem:[%s1 + $0x298] sm:$0xff]
    %v287 = vld [vmem:[%s1 + $0x2a0] sm:$0xff]
    %v288 = vld [vmem:[%s1 + $0x2a8] sm:$0xff]
    %v289 = vld [vmem:[%s1 + $0x2b0] sm:$0xff]
    %v290 = vld [vmem:[%s1 + $0x2b8] sm:$0xff]
    %v291 = vld [vmem:[%s1 + $0x2c0] sm:$0xff]
    %v292 = vld [vmem:[%s1 + $0x2c8] sm:$0xff]
    %v293 = vld [vmem:[%s1 + $0x2d0] sm:$0xff]
    %v294 = vld [vmem:[%s1 + $0x2d8] sm:$0xff]
    %v295 = vld [vmem:[%s1 + $0x2e0] sm:$0xff]
    %v296 = vld [vmem:[%s1 + $0x2e8] sm:$0xff]
    %v297 = vld [vmem:[%s1 + $0x2f0] sm:$0xff]
    %v298 = vld [vmem:[%s1 + $0x2f8] sm:$0xff]
    %v299 = vld [vmem:[%s1 + $0x300] sm:$0xff]
    %v300 = vld [vmem:[%s1 + $0x308] sm:$0xff]
    %v301 = vld [vmem:[%s1 + $0x310] sm:$0xff]
    %v302 = vld [vmem:[%s1 + $0x318] sm:$0xff]
    %v303 = vld [vmem:[%s1 + $0x320] sm:$0xff]
    %v304 = vld [vmem:[%s1 + $0x328] sm:$0xff]
    %v305 = vld [vmem:[%s1 + $0x330] sm:$0xff]
    %v306 = vld [vmem:[%s1 + $0x338] sm:$0xff]
    %v307 = vld [vmem:[%s1 + $0x340] sm:$0xff]
    %v308 = vld [vmem:[%s1 + $0x348] sm:$0xff]
    %v309 = vld [vmem:[%s1 + $0x350] sm:$0xff]
    %v310 = vld [vmem:[%s1 + $0x358] sm:$0xff]
    %v311 = vld [vmem:[%s1 + $0x360] sm:$0xff]
    %v312 = vld [vmem:[%s1 + $0x368] sm:$0xff]
    %v313 = vld [vmem:[%s1 + $0x370] sm:$0xff]
    %v314 = vld [vmem:[%s1 + $0x378] sm:$0xff]
    %v315 = vld [vmem:[%s1 + $0x380] sm:$0xff]
    %v316 = vld [vmem:[%s1 + $0x388] sm:$0xff]
    %v317 = vld [vmem:[%s1 + $0x390] sm:$0xff]
    %v318 = vld [vmem:[%s1 + $0x398] sm:$0xff]
    %v319 = vld [vmem:[%s1 + $0x3a0] sm:$0xff]
    %v320 = vld [vmem:[%s1 + $0x3a8] sm:$0xff]
    %v321 = vld [vmem:[%s1 + $0x3b0] sm:$0xff]
    %v322 = vld [vmem:[%s1 + $0x3b8] sm:$0xff]
    %v323 = vld [vmem:[%s1 + $0x3c0] sm:$0xff]
    %v324 = vld [vmem:[%s1 + $0x3c8] sm:$0xff]
    %v325 = vld [vmem:[%s1 + $0x3d0] sm:$0xff]
    %v326 = vld [vmem:[%s1 + $0x3d8] sm:$0xff]
    %v327 = vld [vmem:[%s1 + $0x3e0] sm:$0xff]
    %v328 = vld [vmem:[%s1 + $0x3e8] sm:$0xff]
    %v329 = vld [vmem:[%s1 + $0x3f0] sm:$0xff]
    %v330 = vld [vmem:[%s1 + $0x3f8] sm:$0xff]
    %v331 = vld [vmem:[%s1 + $0x400] sm:$0xff]
    %v332 = vld [vmem:[%s1 + $0x408] sm:$0xff]
    %v333 = vld [vmem:[%s1 + $0x410] sm:$0xff]
    %v334 = vld [vmem:[%s1 + $0x418] sm:$0xff]
    %v335 = vld [vmem:[%s1 + $0x420] sm:$0xff]
    %v336 = vld [vmem:[%s1 + $0x428] sm:$0xff]
    %v337 = vld [vmem:[%s1 + $0x430] sm:$0xff]
    %v338 = vld [vmem:[%s1 + $0x438] sm:$0xff]
    %v339 = vld [vmem:[%s1 + $0x440] sm:$0xff]
    %v340 = vld [vmem:[%s1 + $0x448] sm:$0xff]
    %v341 = vld [vmem:[%s1 + $0x450] sm:$0xff]
    %v342 = vld [vmem:[%s1 + $0x458] sm:$0xff]
    %v343 = vld [vmem:[%s1 + $0x460] sm:$0xff]
    %v344 = vld [vmem:[%s1 + $0x468] sm:$0xff]
    %v345 = vld [vmem:[%s1 + $0x470] sm:$0xff]
    %v346 = vld [vmem:[%s1 + $0x478] sm:$0xff]
    %v347 = vld [vmem:[%s1 + $0x480] sm:$0xff]
    %v348 = vld [vmem:[%s1 + $0x488] sm:$0xff]
    %v349 = vld [vmem:[%s1 + $0x490] sm:$0xff]
    %v350 = vld [vmem:[%s1 + $0x498] sm:$0xff]
    %v351 = vld [vmem:[%s1 + $0x4a0] sm:$0xff]
    %v352 = vld [vmem:[%s1 + $0x4a8] sm:$0xff]
    %v353 = vld [vmem:[%s1 + $0x4b0] sm:$0xff]
    %v354 = vld [vmem:[%s1 + $0x4b8] sm:$0xff]
    %v355 = vld [vmem:[%s1 + $0x4c0] sm:$0xff]
    %v356 = vld [vmem:[%s1 + $0x4c8] sm:$0xff]
    %v357 = vld [vmem:[%s1 + $0x4d0] sm:$0xff]
    %v358 = vld [vmem:[%s1 + $0x4d8] sm:$0xff]
    %v359 = vld [vmem:[%s1 + $0x4e0] sm:$0xff]
    %v360 = vld [vmem:[%s1 + $0x4e8] sm:$0xff]
    %v361 = vld [vmem:[%s1 + $0x4f0] sm:$0xff]
    %v362 = vld [vmem:[%s1 + $0x4f8] sm:$0xff]
    %v363 = vld [vmem:[%s1 + $0x500] sm:$0xff]
    %v364 = vld [vmem:[%s1 + $0x508] sm:$0xff]
    %v365 = vld [vmem:[%s1 + $0x510] sm:$0xff]
    %v366 = vld [vmem:[%s1 + $0x518] sm:$0xff]
    %v367 = vld [vmem:[%s1 + $0x520] sm:$0xff]
    %v368 = vld [vmem:[%s1 + $0x528] sm:$0xff]
    %v369 = vld [vmem:[%s1 + $0x530] sm:$0xff]
    %v370 = vld [vmem:[%s1 + $0x538] sm:$0xff]
    %v371 = vld [vmem:[%s1 + $0x540] sm:$0xff]
    %v372 = vld [vmem:[%s1 + $0x548] sm:$0xff]
    %v373 = vld [vmem:[%s1 + $0x550] sm:$0xff]
    %v374 = vld [vmem:[%s1 + $0x558] sm:$0xff]
    %v375 = vld [vmem:[%s1 + $0x560] sm:$0xff]
    %v376 = vld [vmem:[%s1 + $0x568] sm:$0xff]
    %v377 = vld [vmem:[%s1 + $0x570] sm:$0xff]
    %v378 = vld [vmem:[%s1 + $0x578] sm:$0xff]
    %v379 = vld [vmem:[%s1 + $0x580] sm:$0xff]
    %v380 = vld [vmem:[%s1 + $0x588] sm:$0xff]
    %v381 = vld [vmem:[%s1 + $0x590] sm:$0xff]
    %v382 = vld [vmem:[%s1 + $0x598] sm:$0xff]
    %v383 = vld [vmem:[%s1 + $0x5a0] sm:$0xff]
    %v384 = vld [vmem:[%s1 + $0x5a8] sm:$0xff]
    %v385 = vld [vmem:[%s1 + $0x5b0] sm:$0xff]
    %v386 = vld [vmem:[%s1 + $0x5b8] sm:$0xff]
    %v387 = vld [vmem:[%s1 + $0x5c0] sm:$0xff]
    %v388 = vld [vmem:[%s1 + $0x5c8] sm:$0xff]
    %v389 = vld [vmem:[%s1 + $0x5d0] sm:$0xff]
    %v390 = vld [vmem:[%s1 + $0x5d8] sm:$0xff]
    %v391 = vld [vmem:[%s1 + $0x5e0] sm:$0xff]
    %v392 = vld [vmem:[%s1 + $0x5e8] sm:$0xff]
    %v393 = vld [vmem:[%s1 + $0x5f0] sm:$0xff]
    %v394 = vld [vmem:[%s1 + $0x5f8] sm:$0xff]
    %v395 = vld [vmem:[%s1 + $0x600] sm:$0xff]
    %v396 = vld [vmem:[%s1 + $0x608] sm:$0xff]
    %v397 = vld [vmem:[%s1 + $0x610] sm:$0xff]
    %v398 = vld [vmem:[%s1 + $0x618] sm:$0xff]
    %v399 = vld [vmem:[%s2] sm:$0xf]
    %v401 = vlaneseq
    %v402 = vshrl.u32 %v401, 7
    %v403 = vsub.s32 0, %v402
    %v404 = vrot.slane %v399, %v403
    %v405 = vlaneseq
    %v406 = vshrl.u32 %v405, 7
    %v407 = vsub.s32 1, %v406
    %v408 = vrot.slane %v399, %v407
    %v409 = vlaneseq
    %v410 = vshrl.u32 %v409, 7
    %v411 = vsub.s32 2, %v410
    %v412 = vrot.slane %v399, %v411
    %v413 = vlaneseq
    %v414 = vshrl.u32 %v413, 7
    %v415 = vsub.s32 3, %v414
    %v416 = vrot.slane %v399, %v415
    %v617 = vunpack.c.l.b16 %v203
    %v618 = vunpack.c.h.b16 %v203
    %v619 = vunpack.c.l.b16 %v204
    %v620 = vunpack.c.h.b16 %v204
    %v621 = vunpack.c.l.b16 %v205
    %v622 = vunpack.c.h.b16 %v205
    %v623 = vunpack.c.l.b16 %v206
    %v624 = vunpack.c.h.b16 %v206
    %v625 = vunpack.c.l.b16 %v207
    %v626 = vunpack.c.h.b16 %v207
    %v627 = vunpack.c.l.b16 %v208
    %v628 = vunpack.c.h.b16 %v208
    %v629 = vunpack.c.l.b16 %v209
    %v630 = vunpack.c.h.b16 %v209
    %v631 = vunpack.c.l.b16 %v210
    %v632 = vunpack.c.h.b16 %v210
    %v633 = vunpack.c.l.b16 %v211
    %v634 = vunpack.c.h.b16 %v211
    %v635 = vunpack.c.l.b16 %v212
    %v636 = vunpack.c.h.b16 %v212
    %v637 = vunpack.c.l.b16 %v213
    %v638 = vunpack.c.h.b16 %v213
    %v639 = vunpack.c.l.b16 %v214
    %v640 = vunpack.c.h.b16 %v214
    %v641 = vunpack.c.l.b16 %v215
    %v642 = vunpack.c.h.b16 %v215
    %v643 = vunpack.c.l.b16 %v216
    %v644 = vunpack.c.h.b16 %v216
    %v645 = vunpack.c.l.b16 %v217
    %v646 = vunpack.c.h.b16 %v217
    %v647 = vunpack.c.l.b16 %v218
    %v648 = vunpack.c.h.b16 %v218
    %v649 = vunpack.c.l.b16 %v219
    %v650 = vunpack.c.h.b16 %v219
    %v651 = vunpack.c.l.b16 %v220
    %v652 = vunpack.c.h.b16 %v220
    %v653 = vunpack.c.l.b16 %v221
    %v654 = vunpack.c.h.b16 %v221
    %v655 = vunpack.c.l.b16 %v222
    %v656 = vunpack.c.h.b16 %v222
    %v657 = vunpack.c.l.b16 %v223
    %v658 = vunpack.c.h.b16 %v223
    %v659 = vunpack.c.l.b16 %v224
    %v660 = vunpack.c.h.b16 %v224
    %v661 = vunpack.c.l.b16 %v225
    %v662 = vunpack.c.h.b16 %v225
    %v663 = vunpack.c.l.b16 %v226
    %v664 = vunpack.c.h.b16 %v226
    %v665 = vunpack.c.l.b16 %v227
    %v666 = vunpack.c.h.b16 %v227
    %v667 = vunpack.c.l.b16 %v228
    %v668 = vunpack.c.h.b16 %v228
    %v669 = vunpack.c.l.b16 %v229
    %v670 = vunpack.c.h.b16 %v229
    %v671 = vunpack.c.l.b16 %v230
    %v672 = vunpack.c.h.b16 %v230
    %v673 = vunpack.c.l.b16 %v231
    %v674 = vunpack.c.h.b16 %v231
    %v675 = vunpack.c.l.b16 %v232
    %v676 = vunpack.c.h.b16 %v232
    %v677 = vunpack.c.l.b16 %v233
    %v678 = vunpack.c.h.b16 %v233
    %v679 = vunpack.c.l.b16 %v234
    %v680 = vunpack.c.h.b16 %v234
    %v681 = vunpack.c.l.b16 %v235
    %v682 = vunpack.c.h.b16 %v235
    %v683 = vunpack.c.l.b16 %v236
    %v684 = vunpack.c.h.b16 %v236
    %v685 = vunpack.c.l.b16 %v237
    %v686 = vunpack.c.h.b16 %v237
    %v687 = vunpack.c.l.b16 %v238
    %v688 = vunpack.c.h.b16 %v238
    %v689 = vunpack.c.l.b16 %v239
    %v690 = vunpack.c.h.b16 %v239
    %v691 = vunpack.c.l.b16 %v240
    %v692 = vunpack.c.h.b16 %v240
    %v693 = vunpack.c.l.b16 %v241
    %v694 = vunpack.c.h.b16 %v241
    %v695 = vunpack.c.l.b16 %v242
    %v696 = vunpack.c.h.b16 %v242
    %v697 = vunpack.c.l.b16 %v243
    %v698 = vunpack.c.h.b16 %v243
    %v699 = vunpack.c.l.b16 %v244
    %v700 = vunpack.c.h.b16 %v244
    %v701 = vunpack.c.l.b16 %v245
    %v702 = vunpack.c.h.b16 %v245
    %v703 = vunpack.c.l.b16 %v246
    %v704 = vunpack.c.h.b16 %v246
    %v705 = vunpack.c.l.b16 %v247
    %v706 = vunpack.c.h.b16 %v247
    %v707 = vunpack.c.l.b16 %v248
    %v708 = vunpack.c.h.b16 %v248
    %v709 = vunpack.c.l.b16 %v249
    %v710 = vunpack.c.h.b16 %v249
    %v711 = vunpack.c.l.b16 %v250
    %v712 = vunpack.c.h.b16 %v250
    %v713 = vunpack.c.l.b16 %v251
    %v714 = vunpack.c.h.b16 %v251
    %v715 = vunpack.c.l.b16 %v252
    %v716 = vunpack.c.h.b16 %v252
    %v717 = vunpack.c.l.b16 %v253
    %v718 = vunpack.c.h.b16 %v253
    %v719 = vunpack.c.l.b16 %v254
    %v720 = vunpack.c.h.b16 %v254
    %v721 = vunpack.c.l.b16 %v255
    %v722 = vunpack.c.h.b16 %v255
    %v723 = vunpack.c.l.b16 %v256
    %v724 = vunpack.c.h.b16 %v256
    %v725 = vunpack.c.l.b16 %v257
    %v726 = vunpack.c.h.b16 %v257
    %v727 = vunpack.c.l.b16 %v258
    %v728 = vunpack.c.h.b16 %v258
    %v729 = vunpack.c.l.b16 %v259
    %v730 = vunpack.c.h.b16 %v259
    %v731 = vunpack.c.l.b16 %v260
    %v732 = vunpack.c.h.b16 %v260
    %v733 = vunpack.c.l.b16 %v261
    %v734 = vunpack.c.h.b16 %v261
    %v735 = vunpack.c.l.b16 %v262
    %v736 = vunpack.c.h.b16 %v262
    %v737 = vunpack.c.l.b16 %v263
    %v738 = vunpack.c.h.b16 %v263
    %v739 = vunpack.c.l.b16 %v264
    %v740 = vunpack.c.h.b16 %v264
    %v741 = vunpack.c.l.b16 %v265
    %v742 = vunpack.c.h.b16 %v265
    %v743 = vunpack.c.l.b16 %v266
    %v744 = vunpack.c.h.b16 %v266
    %v745 = vunpack.c.l.b16 %v267
    %v746 = vunpack.c.h.b16 %v267
    %v747 = vunpack.c.l.b16 %v268
    %v748 = vunpack.c.h.b16 %v268
    %v749 = vunpack.c.l.b16 %v269
    %v750 = vunpack.c.h.b16 %v269
    %v751 = vunpack.c.l.b16 %v270
    %v752 = vunpack.c.h.b16 %v270
    %v753 = vunpack.c.l.b16 %v271
    %v754 = vunpack.c.h.b16 %v271
    %v755 = vunpack.c.l.b16 %v272
    %v756 = vunpack.c.h.b16 %v272
    %v757 = vunpack.c.l.b16 %v273
    %v758 = vunpack.c.h.b16 %v273
    %v759 = vunpack.c.l.b16 %v274
    %v760 = vunpack.c.h.b16 %v274
    %v761 = vunpack.c.l.b16 %v275
    %v762 = vunpack.c.h.b16 %v275
    %v763 = vunpack.c.l.b16 %v276
    %v764 = vunpack.c.h.b16 %v276
    %v765 = vunpack.c.l.b16 %v277
    %v766 = vunpack.c.h.b16 %v277
    %v767 = vunpack.c.l.b16 %v278
    %v768 = vunpack.c.h.b16 %v278
    %v769 = vunpack.c.l.b16 %v279
    %v770 = vunpack.c.h.b16 %v279
    %v771 = vunpack.c.l.b16 %v280
    %v772 = vunpack.c.h.b16 %v280
    %v773 = vunpack.c.l.b16 %v281
    %v774 = vunpack.c.h.b16 %v281
    %v775 = vunpack.c.l.b16 %v282
    %v776 = vunpack.c.h.b16 %v282
    %v777 = vunpack.c.l.b16 %v283
    %v778 = vunpack.c.h.b16 %v283
    %v779 = vunpack.c.l.b16 %v284
    %v780 = vunpack.c.h.b16 %v284
    %v781 = vunpack.c.l.b16 %v285
    %v782 = vunpack.c.h.b16 %v285
    %v783 = vunpack.c.l.b16 %v286
    %v784 = vunpack.c.h.b16 %v286
    %v785 = vunpack.c.l.b16 %v287
    %v786 = vunpack.c.h.b16 %v287
    %v787 = vunpack.c.l.b16 %v288
    %v788 = vunpack.c.h.b16 %v288
    %v789 = vunpack.c.l.b16 %v289
    %v790 = vunpack.c.h.b16 %v289
    %v791 = vunpack.c.l.b16 %v290
    %v792 = vunpack.c.h.b16 %v290
    %v793 = vunpack.c.l.b16 %v291
    %v794 = vunpack.c.h.b16 %v291
    %v795 = vunpack.c.l.b16 %v292
    %v796 = vunpack.c.h.b16 %v292
    %v797 = vunpack.c.l.b16 %v293
    %v798 = vunpack.c.h.b16 %v293
    %v799 = vunpack.c.l.b16 %v294
    %v800 = vunpack.c.h.b16 %v294
    %v801 = vunpack.c.l.b16 %v295
    %v802 = vunpack.c.h.b16 %v295
    %v803 = vunpack.c.l.b16 %v296
    %v804 = vunpack.c.h.b16 %v296
    %v805 = vunpack.c.l.b16 %v297
    %v806 = vunpack.c.h.b16 %v297
    %v807 = vunpack.c.l.b16 %v298
    %v808 = vunpack.c.h.b16 %v298
    %v809 = vunpack.c.l.b16 %v299
    %v810 = vunpack.c.h.b16 %v299
    %v811 = vunpack.c.l.b16 %v300
    %v812 = vunpack.c.h.b16 %v300
    %v813 = vunpack.c.l.b16 %v301
    %v814 = vunpack.c.h.b16 %v301
    %v815 = vunpack.c.l.b16 %v302
    %v816 = vunpack.c.h.b16 %v302
    %v817 = vunpack.c.l.b16 %v303
    %v818 = vunpack.c.h.b16 %v303
    %v819 = vunpack.c.l.b16 %v304
    %v820 = vunpack.c.h.b16 %v304
    %v821 = vunpack.c.l.b16 %v305
    %v822 = vunpack.c.h.b16 %v305
    %v823 = vunpack.c.l.b16 %v306
    %v824 = vunpack.c.h.b16 %v306
    %v825 = vunpack.c.l.b16 %v307
    %v826 = vunpack.c.h.b16 %v307
    %v827 = vunpack.c.l.b16 %v308
    %v828 = vunpack.c.h.b16 %v308
    %v829 = vunpack.c.l.b16 %v309
    %v830 = vunpack.c.h.b16 %v309
    %v831 = vunpack.c.l.b16 %v310
    %v832 = vunpack.c.h.b16 %v310
    %v833 = vunpack.c.l.b16 %v311
    %v834 = vunpack.c.h.b16 %v311
    %v835 = vunpack.c.l.b16 %v312
    %v836 = vunpack.c.h.b16 %v312
    %v837 = vunpack.c.l.b16 %v313
    %v838 = vunpack.c.h.b16 %v313
    %v839 = vunpack.c.l.b16 %v314
    %v840 = vunpack.c.h.b16 %v314
    %v841 = vunpack.c.l.b16 %v315
    %v842 = vunpack.c.h.b16 %v315
    %v843 = vunpack.c.l.b16 %v316
    %v844 = vunpack.c.h.b16 %v316
    %v845 = vunpack.c.l.b16 %v317
    %v846 = vunpack.c.h.b16 %v317
    %v847 = vunpack.c.l.b16 %v318
    %v848 = vunpack.c.h.b16 %v318
    %v849 = vunpack.c.l.b16 %v319
    %v850 = vunpack.c.h.b16 %v319
    %v851 = vunpack.c.l.b16 %v320
    %v852 = vunpack.c.h.b16 %v320
    %v853 = vunpack.c.l.b16 %v321
    %v854 = vunpack.c.h.b16 %v321
    %v855 = vunpack.c.l.b16 %v322
    %v856 = vunpack.c.h.b16 %v322
    %v857 = vunpack.c.l.b16 %v323
    %v858 = vunpack.c.h.b16 %v323
    %v859 = vunpack.c.l.b16 %v324
    %v860 = vunpack.c.h.b16 %v324
    %v861 = vunpack.c.l.b16 %v325
    %v862 = vunpack.c.h.b16 %v325
    %v863 = vunpack.c.l.b16 %v326
    %v864 = vunpack.c.h.b16 %v326
    %v865 = vunpack.c.l.b16 %v327
    %v866 = vunpack.c.h.b16 %v327
    %v867 = vunpack.c.l.b16 %v328
    %v868 = vunpack.c.h.b16 %v328
    %v869 = vunpack.c.l.b16 %v329
    %v870 = vunpack.c.h.b16 %v329
    %v871 = vunpack.c.l.b16 %v330
    %v872 = vunpack.c.h.b16 %v330
    %v873 = vunpack.c.l.b16 %v331
    %v874 = vunpack.c.h.b16 %v331
    %v875 = vunpack.c.l.b16 %v332
    %v876 = vunpack.c.h.b16 %v332
    %v877 = vunpack.c.l.b16 %v333
    %v878 = vunpack.c.h.b16 %v333
    %v879 = vunpack.c.l.b16 %v334
    %v880 = vunpack.c.h.b16 %v334
    %v881 = vunpack.c.l.b16 %v335
    %v882 = vunpack.c.h.b16 %v335
    %v883 = vunpack.c.l.b16 %v336
    %v884 = vunpack.c.h.b16 %v336
    %v885 = vunpack.c.l.b16 %v337
    %v886 = vunpack.c.h.b16 %v337
    %v887 = vunpack.c.l.b16 %v338
    %v888 = vunpack.c.h.b16 %v338
    %v889 = vunpack.c.l.b16 %v339
    %v890 = vunpack.c.h.b16 %v339
    %v891 = vunpack.c.l.b16 %v340
    %v892 = vunpack.c.h.b16 %v340
    %v893 = vunpack.c.l.b16 %v341
    %v894 = vunpack.c.h.b16 %v341
    %v895 = vunpack.c.l.b16 %v342
    %v896 = vunpack.c.h.b16 %v342
    %v897 = vunpack.c.l.b16 %v343
    %v898 = vunpack.c.h.b16 %v343
    %v899 = vunpack.c.l.b16 %v344
    %v900 = vunpack.c.h.b16 %v344
    %v901 = vunpack.c.l.b16 %v345
    %v902 = vunpack.c.h.b16 %v345
    %v903 = vunpack.c.l.b16 %v346
    %v904 = vunpack.c.h.b16 %v346
    %v905 = vunpack.c.l.b16 %v347
    %v906 = vunpack.c.h.b16 %v347
    %v907 = vunpack.c.l.b16 %v348
    %v908 = vunpack.c.h.b16 %v348
    %v909 = vunpack.c.l.b16 %v349
    %v910 = vunpack.c.h.b16 %v349
    %v911 = vunpack.c.l.b16 %v350
    %v912 = vunpack.c.h.b16 %v350
    %v913 = vunpack.c.l.b16 %v351
    %v914 = vunpack.c.h.b16 %v351
    %v915 = vunpack.c.l.b16 %v352
    %v916 = vunpack.c.h.b16 %v352
    %v917 = vunpack.c.l.b16 %v353
    %v918 = vunpack.c.h.b16 %v353
    %v919 = vunpack.c.l.b16 %v354
    %v920 = vunpack.c.h.b16 %v354
    %v921 = vunpack.c.l.b16 %v355
    %v922 = vunpack.c.h.b16 %v355
    %v923 = vunpack.c.l.b16 %v356
    %v924 = vunpack.c.h.b16 %v356
    %v925 = vunpack.c.l.b16 %v357
    %v926 = vunpack.c.h.b16 %v357
    %v927 = vunpack.c.l.b16 %v358
    %v928 = vunpack.c.h.b16 %v358
    %v929 = vunpack.c.l.b16 %v359
    %v930 = vunpack.c.h.b16 %v359
    %v931 = vunpack.c.l.b16 %v360
    %v932 = vunpack.c.h.b16 %v360
    %v933 = vunpack.c.l.b16 %v361
    %v934 = vunpack.c.h.b16 %v361
    %v935 = vunpack.c.l.b16 %v362
    %v936 = vunpack.c.h.b16 %v362
    %v937 = vunpack.c.l.b16 %v363
    %v938 = vunpack.c.h.b16 %v363
    %v939 = vunpack.c.l.b16 %v364
    %v940 = vunpack.c.h.b16 %v364
    %v941 = vunpack.c.l.b16 %v365
    %v942 = vunpack.c.h.b16 %v365
    %v943 = vunpack.c.l.b16 %v366
    %v944 = vunpack.c.h.b16 %v366
    %v945 = vunpack.c.l.b16 %v367
    %v946 = vunpack.c.h.b16 %v367
    %v947 = vunpack.c.l.b16 %v368
    %v948 = vunpack.c.h.b16 %v368
    %v949 = vunpack.c.l.b16 %v369
    %v950 = vunpack.c.h.b16 %v369
    %v951 = vunpack.c.l.b16 %v370
    %v952 = vunpack.c.h.b16 %v370
    %v953 = vunpack.c.l.b16 %v371
    %v954 = vunpack.c.h.b16 %v371
    %v955 = vunpack.c.l.b16 %v372
    %v956 = vunpack.c.h.b16 %v372
    %v957 = vunpack.c.l.b16 %v373
    %v958 = vunpack.c.h.b16 %v373
    %v959 = vunpack.c.l.b16 %v374
    %v960 = vunpack.c.h.b16 %v374
    %v961 = vunpack.c.l.b16 %v375
    %v962 = vunpack.c.h.b16 %v375
    %v963 = vunpack.c.l.b16 %v376
    %v964 = vunpack.c.h.b16 %v376
    %v965 = vunpack.c.l.b16 %v377
    %v966 = vunpack.c.h.b16 %v377
    %v967 = vunpack.c.l.b16 %v378
    %v968 = vunpack.c.h.b16 %v378
    %v969 = vunpack.c.l.b16 %v379
    %v970 = vunpack.c.h.b16 %v379
    %v971 = vunpack.c.l.b16 %v380
    %v972 = vunpack.c.h.b16 %v380
    %v973 = vunpack.c.l.b16 %v381
    %v974 = vunpack.c.h.b16 %v381
    %v975 = vunpack.c.l.b16 %v382
    %v976 = vunpack.c.h.b16 %v382
    %v977 = vunpack.c.l.b16 %v383
    %v978 = vunpack.c.h.b16 %v383
    %v979 = vunpack.c.l.b16 %v384
    %v980 = vunpack.c.h.b16 %v384
    %v981 = vunpack.c.l.b16 %v385
    %v982 = vunpack.c.h.b16 %v385
    %v983 = vunpack.c.l.b16 %v386
    %v984 = vunpack.c.h.b16 %v386
    %v985 = vunpack.c.l.b16 %v387
    %v986 = vunpack.c.h.b16 %v387
    %v987 = vunpack.c.l.b16 %v388
    %v988 = vunpack.c.h.b16 %v388
    %v989 = vunpack.c.l.b16 %v389
    %v990 = vunpack.c.h.b16 %v389
    %v991 = vunpack.c.l.b16 %v390
    %v992 = vunpack.c.h.b16 %v390
    %v993 = vunpack.c.l.b16 %v391
    %v994 = vunpack.c.h.b16 %v391
    %v995 = vunpack.c.l.b16 %v392
    %v996 = vunpack.c.h.b16 %v392
    %v997 = vunpack.c.l.b16 %v393
    %v998 = vunpack.c.h.b16 %v393
    %v999 = vunpack.c.l.b16 %v394
    %v1000 = vunpack.c.h.b16 %v394
    %v1001 = vunpack.c.l.b16 %v395
    %v1002 = vunpack.c.h.b16 %v395
    %v1003 = vunpack.c.l.b16 %v396
    %v1004 = vunpack.c.h.b16 %v396
    %v1005 = vunpack.c.l.b16 %v397
    %v1006 = vunpack.c.h.b16 %v397
    %v1007 = vunpack.c.l.b16 %v398
    %v1008 = vunpack.c.h.b16 %v398
    %v1009 = vpack.c.b16 %v621, %v617
    %v1010 = vpack.c.b16 %v622, %v618
    %v1011 = vpack.c.b16 %v623, %v619
    %v1012 = vpack.c.b16 %v624, %v620
    %v1013 = vpack.c.b16 %v629, %v625
    %v1014 = vpack.c.b16 %v630, %v626
    %v1015 = vpack.c.b16 %v631, %v627
    %v1016 = vpack.c.b16 %v632, %v628
    %v1017 = vpack.c.b16 %v637, %v633
    %v1018 = vpack.c.b16 %v638, %v634
    %v1019 = vpack.c.b16 %v639, %v635
    %v1020 = vpack.c.b16 %v640, %v636
    %v1021 = vpack.c.b16 %v645, %v641
    %v1022 = vpack.c.b16 %v646, %v642
    %v1023 = vpack.c.b16 %v647, %v643
    %v1024 = vpack.c.b16 %v648, %v644
    %v1025 = vpack.c.b16 %v653, %v649
    %v1026 = vpack.c.b16 %v654, %v650
    %v1027 = vpack.c.b16 %v655, %v651
    %v1028 = vpack.c.b16 %v656, %v652
    %v1029 = vpack.c.b16 %v661, %v657
    %v1030 = vpack.c.b16 %v662, %v658
    %v1031 = vpack.c.b16 %v663, %v659
    %v1032 = vpack.c.b16 %v664, %v660
    %v1033 = vpack.c.b16 %v669, %v665
    %v1034 = vpack.c.b16 %v670, %v666
    %v1035 = vpack.c.b16 %v671, %v667
    %v1036 = vpack.c.b16 %v672, %v668
    %v1037 = vpack.c.b16 %v677, %v673
    %v1038 = vpack.c.b16 %v678, %v674
    %v1039 = vpack.c.b16 %v679, %v675
    %v1040 = vpack.c.b16 %v680, %v676
    %v1041 = vpack.c.b16 %v685, %v681
    %v1042 = vpack.c.b16 %v686, %v682
    %v1043 = vpack.c.b16 %v687, %v683
    %v1044 = vpack.c.b16 %v688, %v684
    %v1045 = vpack.c.b16 %v693, %v689
    %v1046 = vpack.c.b16 %v694, %v690
    %v1047 = vpack.c.b16 %v695, %v691
    %v1048 = vpack.c.b16 %v696, %v692
    %v1049 = vpack.c.b16 %v701, %v697
    %v1050 = vpack.c.b16 %v702, %v698
    %v1051 = vpack.c.b16 %v703, %v699
    %v1052 = vpack.c.b16 %v704, %v700
    %v1053 = vpack.c.b16 %v709, %v705
    %v1054 = vpack.c.b16 %v710, %v706
    %v1055 = vpack.c.b16 %v711, %v707
    %v1056 = vpack.c.b16 %v712, %v708
    %v1057 = vpack.c.b16 %v717, %v713
    %v1058 = vpack.c.b16 %v718, %v714
    %v1059 = vpack.c.b16 %v719, %v715
    %v1060 = vpack.c.b16 %v720, %v716
    %v1061 = vpack.c.b16 %v725, %v721
    %v1062 = vpack.c.b16 %v726, %v722
    %v1063 = vpack.c.b16 %v727, %v723
    %v1064 = vpack.c.b16 %v728, %v724
    %v1065 = vpack.c.b16 %v733, %v729
    %v1066 = vpack.c.b16 %v734, %v730
    %v1067 = vpack.c.b16 %v735, %v731
    %v1068 = vpack.c.b16 %v736, %v732
    %v1069 = vpack.c.b16 %v741, %v737
    %v1070 = vpack.c.b16 %v742, %v738
    %v1071 = vpack.c.b16 %v743, %v739
    %v1072 = vpack.c.b16 %v744, %v740
    %v1073 = vpack.c.b16 %v749, %v745
    %v1074 = vpack.c.b16 %v750, %v746
    %v1075 = vpack.c.b16 %v751, %v747
    %v1076 = vpack.c.b16 %v752, %v748
    %v1077 = vpack.c.b16 %v757, %v753
    %v1078 = vpack.c.b16 %v758, %v754
    %v1079 = vpack.c.b16 %v759, %v755
    %v1080 = vpack.c.b16 %v760, %v756
    %v1081 = vpack.c.b16 %v765, %v761
    %v1082 = vpack.c.b16 %v766, %v762
    %v1083 = vpack.c.b16 %v767, %v763
    %v1084 = vpack.c.b16 %v768, %v764
    %v1085 = vpack.c.b16 %v773, %v769
    %v1086 = vpack.c.b16 %v774, %v770
    %v1087 = vpack.c.b16 %v775, %v771
    %v1088 = vpack.c.b16 %v776, %v772
    %v1089 = vpack.c.b16 %v781, %v777
    %v1090 = vpack.c.b16 %v782, %v778
    %v1091 = vpack.c.b16 %v783, %v779
    %v1092 = vpack.c.b16 %v784, %v780
    %v1093 = vpack.c.b16 %v789, %v785
    %v1094 = vpack.c.b16 %v790, %v786
    %v1095 = vpack.c.b16 %v791, %v787
    %v1096 = vpack.c.b16 %v792, %v788
    %v1097 = vpack.c.b16 %v797, %v793
    %v1098 = vpack.c.b16 %v798, %v794
    %v1099 = vpack.c.b16 %v799, %v795
    %v1100 = vpack.c.b16 %v800, %v796
    %v1101 = vpack.c.b16 %v805, %v801
    %v1102 = vpack.c.b16 %v806, %v802
    %v1103 = vpack.c.b16 %v807, %v803
    %v1104 = vpack.c.b16 %v808, %v804
    %v1105 = vpack.c.b16 %v813, %v809
    %v1106 = vpack.c.b16 %v814, %v810
    %v1107 = vpack.c.b16 %v815, %v811
    %v1108 = vpack.c.b16 %v816, %v812
    %v1109 = vpack.c.b16 %v821, %v817
    %v1110 = vpack.c.b16 %v822, %v818
    %v1111 = vpack.c.b16 %v823, %v819
    %v1112 = vpack.c.b16 %v824, %v820
    %v1113 = vpack.c.b16 %v829, %v825
    %v1114 = vpack.c.b16 %v830, %v826
    %v1115 = vpack.c.b16 %v831, %v827
    %v1116 = vpack.c.b16 %v832, %v828
    %v1117 = vpack.c.b16 %v837, %v833
    %v1118 = vpack.c.b16 %v838, %v834
    %v1119 = vpack.c.b16 %v839, %v835
    %v1120 = vpack.c.b16 %v840, %v836
    %v1121 = vpack.c.b16 %v845, %v841
    %v1122 = vpack.c.b16 %v846, %v842
    %v1123 = vpack.c.b16 %v847, %v843
    %v1124 = vpack.c.b16 %v848, %v844
    %v1125 = vpack.c.b16 %v853, %v849
    %v1126 = vpack.c.b16 %v854, %v850
    %v1127 = vpack.c.b16 %v855, %v851
    %v1128 = vpack.c.b16 %v856, %v852
    %v1129 = vpack.c.b16 %v861, %v857
    %v1130 = vpack.c.b16 %v862, %v858
    %v1131 = vpack.c.b16 %v863, %v859
    %v1132 = vpack.c.b16 %v864, %v860
    %v1133 = vpack.c.b16 %v869, %v865
    %v1134 = vpack.c.b16 %v870, %v866
    %v1135 = vpack.c.b16 %v871, %v867
    %v1136 = vpack.c.b16 %v872, %v868
    %v1137 = vpack.c.b16 %v877, %v873
    %v1138 = vpack.c.b16 %v878, %v874
    %v1139 = vpack.c.b16 %v879, %v875
    %v1140 = vpack.c.b16 %v880, %v876
    %v1141 = vpack.c.b16 %v885, %v881
    %v1142 = vpack.c.b16 %v886, %v882
    %v1143 = vpack.c.b16 %v887, %v883
    %v1144 = vpack.c.b16 %v888, %v884
    %v1145 = vpack.c.b16 %v893, %v889
    %v1146 = vpack.c.b16 %v894, %v890
    %v1147 = vpack.c.b16 %v895, %v891
    %v1148 = vpack.c.b16 %v896, %v892
    %v1149 = vpack.c.b16 %v901, %v897
    %v1150 = vpack.c.b16 %v902, %v898
    %v1151 = vpack.c.b16 %v903, %v899
    %v1152 = vpack.c.b16 %v904, %v900
    %v1153 = vpack.c.b16 %v909, %v905
    %v1154 = vpack.c.b16 %v910, %v906
    %v1155 = vpack.c.b16 %v911, %v907
    %v1156 = vpack.c.b16 %v912, %v908
    %v1157 = vpack.c.b16 %v917, %v913
    %v1158 = vpack.c.b16 %v918, %v914
    %v1159 = vpack.c.b16 %v919, %v915
    %v1160 = vpack.c.b16 %v920, %v916
    %v1161 = vpack.c.b16 %v925, %v921
    %v1162 = vpack.c.b16 %v926, %v922
    %v1163 = vpack.c.b16 %v927, %v923
    %v1164 = vpack.c.b16 %v928, %v924
    %v1165 = vpack.c.b16 %v933, %v929
    %v1166 = vpack.c.b16 %v934, %v930
    %v1167 = vpack.c.b16 %v935, %v931
    %v1168 = vpack.c.b16 %v936, %v932
    %v1169 = vpack.c.b16 %v941, %v937
    %v1170 = vpack.c.b16 %v942, %v938
    %v1171 = vpack.c.b16 %v943, %v939
    %v1172 = vpack.c.b16 %v944, %v940
    %v1173 = vpack.c.b16 %v949, %v945
    %v1174 = vpack.c.b16 %v950, %v946
    %v1175 = vpack.c.b16 %v951, %v947
    %v1176 = vpack.c.b16 %v952, %v948
    %v1177 = vpack.c.b16 %v957, %v953
    %v1178 = vpack.c.b16 %v958, %v954
    %v1179 = vpack.c.b16 %v959, %v955
    %v1180 = vpack.c.b16 %v960, %v956
    %v1181 = vpack.c.b16 %v965, %v961
    %v1182 = vpack.c.b16 %v966, %v962
    %v1183 = vpack.c.b16 %v967, %v963
    %v1184 = vpack.c.b16 %v968, %v964
    %v1185 = vpack.c.b16 %v973, %v969
    %v1186 = vpack.c.b16 %v974, %v970
    %v1187 = vpack.c.b16 %v975, %v971
    %v1188 = vpack.c.b16 %v976, %v972
    %v1189 = vpack.c.b16 %v981, %v977
    %v1190 = vpack.c.b16 %v982, %v978
    %v1191 = vpack.c.b16 %v983, %v979
    %v1192 = vpack.c.b16 %v984, %v980
    %v1193 = vpack.c.b16 %v989, %v985
    %v1194 = vpack.c.b16 %v990, %v986
    %v1195 = vpack.c.b16 %v991, %v987
    %v1196 = vpack.c.b16 %v992, %v988
    %v1197 = vpack.c.b16 %v997, %v993
    %v1198 = vpack.c.b16 %v998, %v994
    %v1199 = vpack.c.b16 %v999, %v995
    %v1200 = vpack.c.b16 %v1000, %v996
    %v1201 = vpack.c.b16 %v1005, %v1001
    %v1202 = vpack.c.b16 %v1006, %v1002
    %v1203 = vpack.c.b16 %v1007, %v1003
    %v1204 = vpack.c.b16 %v1008, %v1004
    %vm1401 = vcmask 130048
    %v1403 = vsel %vm1401, %v153, 0
    %v1406 = vsel %vm1401, %v160, 0
    %v1409 = vsel %vm1401, %v167, 0
    %v1412 = vsel %vm1401, %v174, 0
    %v1415 = vsel %vm1401, %v181, 0
    %v1418 = vsel %vm1401, %v188, 0
    %v1421 = vsel %vm1401, %v195, 0
    %v1424 = vsel %vm1401, %v202, 0
    %1426 = vmatprep.subr.bf16.mxu0 %v1010
    %1427 = vmatpush1.bf16.msra.mxu0 %v1009
    %1428 = vmatprep.subr.bf16.mxu0 %v1014
    %1429 = vmatpush1.bf16.msra.mxu0 %v1013
    %1430 = vmatprep.subr.bf16.mxu0 %v1018
    %1431 = vmatpush1.bf16.msra.mxu0 %v1017
    %1432 = vmatprep.subr.bf16.mxu0 %v1022
    %1433 = vmatpush1.bf16.msra.mxu0 %v1021
    %1434 = vmatprep.subr.bf16.mxu0 %v1026
    %1435 = vmatpush1.bf16.msra.mxu0 %v1025
    %1436 = vmatprep.subr.bf16.mxu0 %v1030
    %1437 = vmatpush1.bf16.msra.mxu0 %v1029
    %1438 = vmatprep.subr.bf16.mxu0 %v1034
    %1439 = vmatpush1.bf16.msra.mxu0 %v1033
    %1440 = vmatprep.subr.bf16.mxu0 %v1038
    %1441 = vmatpush1.bf16.msra.mxu0 %v1037
    %1442 = vmatprep.subr.bf16.mxu0 %v1042
    %1443 = vmatpush1.bf16.msra.mxu0 %v1041
    %1444 = vmatprep.subr.bf16.mxu0 %v1046
    %1445 = vmatpush1.bf16.msra.mxu0 %v1045
    %1446 = vmatprep.subr.bf16.mxu0 %v1050
    %1447 = vmatpush1.bf16.msra.mxu0 %v1049
    %1448 = vmatprep.subr.bf16.mxu0 %v1054
    %1449 = vmatpush1.bf16.msra.mxu0 %v1053
    %1450 = vmatprep.subr.bf16.mxu0 %v1058
    %1451 = vmatpush1.bf16.msra.mxu0 %v1057
    %1452 = vmatprep.subr.bf16.mxu0 %v1062
    %1453 = vmatpush1.bf16.msra.mxu0 %v1061
    %1454 = vmatprep.subr.bf16.mxu0 %v1066
    %1455 = vmatpush1.bf16.msra.mxu0 %v1065
    %1456 = vmatprep.subr.bf16.mxu0 %v1070
    %1457 = vmatpush1.bf16.msra.mxu0 %v1069
    %1458 = vmatprep.mubr.bf16.mxu0 %v148
    %1459 = vmatmul.mubr.bf16.gmra.mrb[0].mxu0 %v147
    %v1460 = vpop.f32.mrb[0].mxu0
    %v1461 = vadd.f32 %v404, %v1460
    %v1462 = vpop.f32.mrb[0].mxu0
    %v1463 = vadd.f32 %v408, %v1462
    %v1464 = vpop.f32.mrb[0].mxu0
    %v1465 = vadd.f32 %v404, %v1464
    %v1466 = vpop.f32.mrb[0].mxu0
    %v1467 = vadd.f32 %v408, %v1466
    %1468 = vmatprep.mubr.bf16.mxu0 %v155
    %1469 = vmatmul.mubr.bf16.gmra.mrb[0].mxu0 %v154
    %v1470 = vpop.f32.mrb[0].mxu0
    %v1471 = vadd.f32 %v404, %v1470
    %v1472 = vpop.f32.mrb[0].mxu0
    %v1473 = vadd.f32 %v408, %v1472
    %v1474 = vpop.f32.mrb[0].mxu0
    %v1475 = vadd.f32 %v404, %v1474
    %v1476 = vpop.f32.mrb[0].mxu0
    %v1477 = vadd.f32 %v408, %v1476
    %1478 = vmatprep.mubr.bf16.mxu0 %v162
    %1479 = vmatmul.mubr.bf16.gmra.mrb[0].mxu0 %v161
    %v1480 = vpop.f32.mrb[0].mxu0
    %v1481 = vadd.f32 %v404, %v1480
    %v1482 = vpop.f32.mrb[0].mxu0
    %v1483 = vadd.f32 %v408, %v1482
    %v1484 = vpop.f32.mrb[0].mxu0
    %v1485 = vadd.f32 %v404, %v1484
    %v1486 = vpop.f32.mrb[0].mxu0
    %v1487 = vadd.f32 %v408, %v1486
    %1488 = vmatprep.mubr.bf16.mxu0 %v169
    %1489 = vmatmul.mubr.bf16.gmra.mrb[0].mxu0 %v168
    %v1490 = vpop.f32.mrb[0].mxu0
    %v1491 = vadd.f32 %v404, %v1490
    %v1492 = vpop.f32.mrb[0].mxu0
    %v1493 = vadd.f32 %v408, %v1492
    %v1494 = vpop.f32.mrb[0].mxu0
    %v1495 = vadd.f32 %v404, %v1494
    %v1496 = vpop.f32.mrb[0].mxu0
    %v1497 = vadd.f32 %v408, %v1496
    %1498 = vmatprep.mubr.bf16.mxu0 %v176
    %1499 = vmatmul.mubr.bf16.gmra.mrb[0].mxu0 %v175
    %v1500 = vpop.f32.mrb[0].mxu0
    %v1501 = vadd.f32 %v404, %v1500
    %v1502 = vpop.f32.mrb[0].mxu0
    %v1503 = vadd.f32 %v408, %v1502
    %v1504 = vpop.f32.mrb[0].mxu0
    %v1505 = vadd.f32 %v404, %v1504
    %v1506 = vpop.f32.mrb[0].mxu0
    %v1507 = vadd.f32 %v408, %v1506
    %1508 = vmatprep.mubr.bf16.mxu0 %v183
    %1509 = vmatmul.mubr.bf16.gmra.mrb[0].mxu0 %v182
    %v1510 = vpop.f32.mrb[0].mxu0
    %v1511 = vadd.f32 %v404, %v1510
    %v1512 = vpop.f32.mrb[0].mxu0
    %v1513 = vadd.f32 %v408, %v1512
    %v1514 = vpop.f32.mrb[0].mxu0
    %v1515 = vadd.f32 %v404, %v1514
    %v1516 = vpop.f32.mrb[0].mxu0
    %v1517 = vadd.f32 %v408, %v1516
    %1518 = vmatprep.mubr.bf16.mxu0 %v190
    %1519 = vmatmul.mubr.bf16.gmra.mrb[0].mxu0 %v189
    %v1520 = vpop.f32.mrb[0].mxu0
    %v1521 = vadd.f32 %v404, %v1520
    %v1522 = vpop.f32.mrb[0].mxu0
    %v1523 = vadd.f32 %v408, %v1522
    %v1524 = vpop.f32.mrb[0].mxu0
    %v1525 = vadd.f32 %v404, %v1524
    %v1526 = vpop.f32.mrb[0].mxu0
    %v1527 = vadd.f32 %v408, %v1526
    %1528 = vmatprep.mubr.bf16.mxu0 %v197
    %1529 = vmatmul.mubr.bf16.gmra.mrb[0].mxu0 %v196
    %v1530 = vpop.f32.mrb[0].mxu0
    %v1531 = vadd.f32 %v404, %v1530
    %v1532 = vpop.f32.mrb[0].mxu0
    %v1533 = vadd.f32 %v408, %v1532
    %v1534 = vpop.f32.mrb[0].mxu0
    %v1535 = vadd.f32 %v404, %v1534
    %v1536 = vpop.f32.mrb[0].mxu0
    %v1537 = vadd.f32 %v408, %v1536
    %1538 = vdwg.mxu0
    %1539 = vmatprep.subr.bf16.mxu0 %v1074
    %1540 = vmatpush1.bf16.msra.mxu0 %v1073
    %1541 = vmatprep.subr.bf16.mxu0 %v1078
    %1542 = vmatpush1.bf16.msra.mxu0 %v1077
    %1543 = vmatprep.subr.bf16.mxu0 %v1082
    %1544 = vmatpush1.bf16.msra.mxu0 %v1081
    %1545 = vmatprep.subr.bf16.mxu0 %v1086
    %1546 = vmatpush1.bf16.msra.mxu0 %v1085
    %1547 = vmatprep.subr.bf16.mxu0 %v1090
    %1548 = vmatpush1.bf16.msra.mxu0 %v1089
    %1549 = vmatprep.subr.bf16.mxu0 %v1094
    %1550 = vmatpush1.bf16.msra.mxu0 %v1093
    %1551 = vmatprep.subr.bf16.mxu0 %v1098
    %1552 = vmatpush1.bf16.msra.mxu0 %v1097
    %1553 = vmatprep.subr.bf16.mxu0 %v1102
    %1554 = vmatpush1.bf16.msra.mxu0 %v1101
    %1555 = vmatprep.subr.bf16.mxu0 %v1106
    %1556 = vmatpush1.bf16.msra.mxu0 %v1105
    %1557 = vmatprep.subr.bf16.mxu0 %v1110
    %1558 = vmatpush1.bf16.msra.mxu0 %v1109
    %1559 = vmatprep.subr.bf16.mxu0 %v1114
    %1560 = vmatpush1.bf16.msra.mxu0 %v1113
    %1561 = vmatprep.subr.bf16.mxu0 %v1118
    %1562 = vmatpush1.bf16.msra.mxu0 %v1117
    %1563 = vmatprep.subr.bf16.mxu0 %v1122
    %1564 = vmatpush1.bf16.msra.mxu0 %v1121
    %1565 = vmatprep.subr.bf16.mxu0 %v1126
    %1566 = vmatpush1.bf16.msra.mxu0 %v1125
    %1567 = vmatprep.subr.bf16.mxu0 %v1130
    %1568 = vmatpush1.bf16.msra.mxu0 %v1129
    %1569 = vmatprep.subr.bf16.mxu0 %v1134
    %1570 = vmatpush1.bf16.msra.mxu0 %v1133
    %1571 = vmatprep.mubr.bf16.mxu0 %v150
    %1572 = vmatmul.mubr.bf16.gmra.mrb[0].mxu0 %v149
    %v1573 = vpop.f32.mrb[0].mxu0
    %v1574 = vadd.f32 %v1461, %v1573
    %v1575 = vpop.f32.mrb[0].mxu0
    %v1576 = vadd.f32 %v1463, %v1575
    %v1577 = vpop.f32.mrb[0].mxu0
    %v1578 = vadd.f32 %v1465, %v1577
    %v1579 = vpop.f32.mrb[0].mxu0
    %v1580 = vadd.f32 %v1467, %v1579
    %1581 = vmatprep.mubr.bf16.mxu0 %v157
    %1582 = vmatmul.mubr.bf16.gmra.mrb[0].mxu0 %v156
    %v1583 = vpop.f32.mrb[0].mxu0
    %v1584 = vadd.f32 %v1471, %v1583
    %v1585 = vpop.f32.mrb[0].mxu0
    %v1586 = vadd.f32 %v1473, %v1585
    %v1587 = vpop.f32.mrb[0].mxu0
    %v1588 = vadd.f32 %v1475, %v1587
    %v1589 = vpop.f32.mrb[0].mxu0
    %v1590 = vadd.f32 %v1477, %v1589
    %1591 = vmatprep.mubr.bf16.mxu0 %v164
    %1592 = vmatmul.mubr.bf16.gmra.mrb[0].mxu0 %v163
    %v1593 = vpop.f32.mrb[0].mxu0
    %v1594 = vadd.f32 %v1481, %v1593
    %v1595 = vpop.f32.mrb[0].mxu0
    %v1596 = vadd.f32 %v1483, %v1595
    %v1597 = vpop.f32.mrb[0].mxu0
    %v1598 = vadd.f32 %v1485, %v1597
    %v1599 = vpop.f32.mrb[0].mxu0
    %v1600 = vadd.f32 %v1487, %v1599
    %1601 = vmatprep.mubr.bf16.mxu0 %v171
    %1602 = vmatmul.mubr.bf16.gmra.mrb[0].mxu0 %v170
    %v1603 = vpop.f32.mrb[0].mxu0
    %v1604 = vadd.f32 %v1491, %v1603
    %v1605 = vpop.f32.mrb[0].mxu0
    %v1606 = vadd.f32 %v1493, %v1605
    %v1607 = vpop.f32.mrb[0].mxu0
    %v1608 = vadd.f32 %v1495, %v1607
    %v1609 = vpop.f32.mrb[0].mxu0
    %v1610 = vadd.f32 %v1497, %v1609
    %1611 = vmatprep.mubr.bf16.mxu0 %v178
    %1612 = vmatmul.mubr.bf16.gmra.mrb[0].mxu0 %v177
    %v1613 = vpop.f32.mrb[0].mxu0
    %v1614 = vadd.f32 %v1501, %v1613
    %v1615 = vpop.f32.mrb[0].mxu0
    %v1616 = vadd.f32 %v1503, %v1615
    %v1617 = vpop.f32.mrb[0].mxu0
    %v1618 = vadd.f32 %v1505, %v1617
    %v1619 = vpop.f32.mrb[0].mxu0
    %v1620 = vadd.f32 %v1507, %v1619
    %1621 = vmatprep.mubr.bf16.mxu0 %v185
    %1622 = vmatmul.mubr.bf16.gmra.mrb[0].mxu0 %v184
    %v1623 = vpop.f32.mrb[0].mxu0
    %v1624 = vadd.f32 %v1511, %v1623
    %v1625 = vpop.f32.mrb[0].mxu0
    %v1626 = vadd.f32 %v1513, %v1625
    %v1627 = vpop.f32.mrb[0].mxu0
    %v1628 = vadd.f32 %v1515, %v1627
    %v1629 = vpop.f32.mrb[0].mxu0
    %v1630 = vadd.f32 %v1517, %v1629
    %1631 = vmatprep.mubr.bf16.mxu0 %v192
    %1632 = vmatmul.mubr.bf16.gmra.mrb[0].mxu0 %v191
    %v1633 = vpop.f32.mrb[0].mxu0
    %v1634 = vadd.f32 %v1521, %v1633
    %v1635 = vpop.f32.mrb[0].mxu0
    %v1636 = vadd.f32 %v1523, %v1635
    %v1637 = vpop.f32.mrb[0].mxu0
    %v1638 = vadd.f32 %v1525, %v1637
    %v1639 = vpop.f32.mrb[0].mxu0
    %v1640 = vadd.f32 %v1527, %v1639
    %1641 = vmatprep.mubr.bf16.mxu0 %v199
    %1642 = vmatmul.mubr.bf16.gmra.mrb[0].mxu0 %v198
    %v1643 = vpop.f32.mrb[0].mxu0
    %v1644 = vadd.f32 %v1531, %v1643
    %v1645 = vpop.f32.mrb[0].mxu0
    %v1646 = vadd.f32 %v1533, %v1645
    %v1647 = vpop.f32.mrb[0].mxu0
    %v1648 = vadd.f32 %v1535, %v1647
    %v1649 = vpop.f32.mrb[0].mxu0
    %v1650 = vadd.f32 %v1537, %v1649
    %1651 = vdwg.mxu0
    %1652 = vmatprep.subr.bf16.mxu0 %v1138
    %1653 = vmatpush1.bf16.msra.mxu0 %v1137
    %1654 = vmatprep.subr.bf16.mxu0 %v1142
    %1655 = vmatpush1.bf16.msra.mxu0 %v1141
    %1656 = vmatprep.subr.bf16.mxu0 %v1146
    %1657 = vmatpush1.bf16.msra.mxu0 %v1145
    %1658 = vmatprep.subr.bf16.mxu0 %v1150
    %1659 = vmatpush1.bf16.msra.mxu0 %v1149
    %1660 = vmatprep.subr.bf16.mxu0 %v1154
    %1661 = vmatpush1.bf16.msra.mxu0 %v1153
    %1662 = vmatprep.subr.bf16.mxu0 %v1158
    %1663 = vmatpush1.bf16.msra.mxu0 %v1157
    %1664 = vmatprep.subr.bf16.mxu0 %v1162
    %1665 = vmatpush1.bf16.msra.mxu0 %v1161
    %1666 = vmatprep.subr.bf16.mxu0 %v1166
    %1667 = vmatpush1.bf16.msra.mxu0 %v1165
    %1668 = vmatprep.subr.bf16.mxu0 %v1170
    %1669 = vmatpush1.bf16.msra.mxu0 %v1169
    %1670 = vmatprep.subr.bf16.mxu0 %v1174
    %1671 = vmatpush1.bf16.msra.mxu0 %v1173
    %1672 = vmatprep.subr.bf16.mxu0 %v1178
    %1673 = vmatpush1.bf16.msra.mxu0 %v1177
    %1674 = vmatprep.subr.bf16.mxu0 %v1182
    %1675 = vmatpush1.bf16.msra.mxu0 %v1181
    %1676 = vmatprep.subr.bf16.mxu0 %v1186
    %1677 = vmatpush1.bf16.msra.mxu0 %v1185
    %1678 = vmatprep.subr.bf16.mxu0 %v1190
    %1679 = vmatpush1.bf16.msra.mxu0 %v1189
    %1680 = vmatprep.subr.bf16.mxu0 %v1194
    %1681 = vmatpush1.bf16.msra.mxu0 %v1193
    %1682 = vmatprep.subr.bf16.mxu0 %v1198
    %1683 = vmatpush1.bf16.msra.mxu0 %v1197
    %1684 = vmatprep.mubr.bf16.mxu0 %v152
    %1685 = vmatmul.mubr.bf16.gmra.mrb[0].mxu0 %v151
    %v1686 = vpop.f32.mrb[0].mxu0
    %v1687 = vadd.f32 %v1574, %v1686
    %v1688 = vpop.f32.mrb[0].mxu0
    %v1689 = vadd.f32 %v1576, %v1688
    %v1690 = vpop.f32.mrb[0].mxu0
    %v1691 = vadd.f32 %v1578, %v1690
    %v1692 = vpop.f32.mrb[0].mxu0
    %v1693 = vadd.f32 %v1580, %v1692
    %1694 = vmatprep.mubr.bf16.mxu0 %v159
    %1695 = vmatmul.mubr.bf16.gmra.mrb[0].mxu0 %v158
    %v1696 = vpop.f32.mrb[0].mxu0
    %v1697 = vadd.f32 %v1584, %v1696
    %v1698 = vpop.f32.mrb[0].mxu0
    %v1699 = vadd.f32 %v1586, %v1698
    %v1700 = vpop.f32.mrb[0].mxu0
    %v1701 = vadd.f32 %v1588, %v1700
    %v1702 = vpop.f32.mrb[0].mxu0
    %v1703 = vadd.f32 %v1590, %v1702
    %1704 = vmatprep.mubr.bf16.mxu0 %v166
    %1705 = vmatmul.mubr.bf16.gmra.mrb[0].mxu0 %v165
    %v1706 = vpop.f32.mrb[0].mxu0
    %v1707 = vadd.f32 %v1594, %v1706
    %v1708 = vpop.f32.mrb[0].mxu0
    %v1709 = vadd.f32 %v1596, %v1708
    %v1710 = vpop.f32.mrb[0].mxu0
    %v1711 = vadd.f32 %v1598, %v1710
    %v1712 = vpop.f32.mrb[0].mxu0
    %v1713 = vadd.f32 %v1600, %v1712
    %1714 = vmatprep.mubr.bf16.mxu0 %v173
    %1715 = vmatmul.mubr.bf16.gmra.mrb[0].mxu0 %v172
    %v1716 = vpop.f32.mrb[0].mxu0
    %v1717 = vadd.f32 %v1604, %v1716
    %v1718 = vpop.f32.mrb[0].mxu0
    %v1719 = vadd.f32 %v1606, %v1718
    %v1720 = vpop.f32.mrb[0].mxu0
    %v1721 = vadd.f32 %v1608, %v1720
    %v1722 = vpop.f32.mrb[0].mxu0
    %v1723 = vadd.f32 %v1610, %v1722
    %1724 = vmatprep.mubr.bf16.mxu0 %v180
    %1725 = vmatmul.mubr.bf16.gmra.mrb[0].mxu0 %v179
    %v1726 = vpop.f32.mrb[0].mxu0
    %v1727 = vadd.f32 %v1614, %v1726
    %v1728 = vpop.f32.mrb[0].mxu0
    %v1729 = vadd.f32 %v1616, %v1728
    %v1730 = vpop.f32.mrb[0].mxu0
    %v1731 = vadd.f32 %v1618, %v1730
    %v1732 = vpop.f32.mrb[0].mxu0
    %v1733 = vadd.f32 %v1620, %v1732
    %1734 = vmatprep.mubr.bf16.mxu0 %v187
    %1735 = vmatmul.mubr.bf16.gmra.mrb[0].mxu0 %v186
    %v1736 = vpop.f32.mrb[0].mxu0
    %v1737 = vadd.f32 %v1624, %v1736
    %v1738 = vpop.f32.mrb[0].mxu0
    %v1739 = vadd.f32 %v1626, %v1738
    %v1740 = vpop.f32.mrb[0].mxu0
    %v1741 = vadd.f32 %v1628, %v1740
    %v1742 = vpop.f32.mrb[0].mxu0
    %v1743 = vadd.f32 %v1630, %v1742
    %1744 = vmatprep.mubr.bf16.mxu0 %v194
    %1745 = vmatmul.mubr.bf16.gmra.mrb[0].mxu0 %v193
    %v1746 = vpop.f32.mrb[0].mxu0
    %v1747 = vadd.f32 %v1634, %v1746
    %v1748 = vpop.f32.mrb[0].mxu0
    %v1749 = vadd.f32 %v1636, %v1748
    %v1750 = vpop.f32.mrb[0].mxu0
    %v1751 = vadd.f32 %v1638, %v1750
    %v1752 = vpop.f32.mrb[0].mxu0
    %v1753 = vadd.f32 %v1640, %v1752
    %1754 = vmatprep.mubr.bf16.mxu0 %v201
    %1755 = vmatmul.mubr.bf16.gmra.mrb[0].mxu0 %v200
    %v1756 = vpop.f32.mrb[0].mxu0
    %v1757 = vadd.f32 %v1644, %v1756
    %v1758 = vpop.f32.mrb[0].mxu0
    %v1759 = vadd.f32 %v1646, %v1758
    %v1760 = vpop.f32.mrb[0].mxu0
    %v1761 = vadd.f32 %v1648, %v1760
    %v1762 = vpop.f32.mrb[0].mxu0
    %v1763 = vadd.f32 %v1650, %v1762
    %1764 = vdwg.mxu0
    %1765 = vmatprep.subr.bf16.mxu0 %v1202
    %1766 = vmatpush1.bf16.msra.mxu0 %v1201
    %1767 = vmatprep.subr.bf16.mxu0 0
    %1768 = vmatpush1.bf16.msra.mxu0 0
    %1769 = vmatprep.subr.bf16.mxu0 0
    %1770 = vmatpush1.bf16.msra.mxu0 0
    %1771 = vmatprep.subr.bf16.mxu0 0
    %1772 = vmatpush1.bf16.msra.mxu0 0
    %1773 = vmatprep.subr.bf16.mxu0 0
    %1774 = vmatpush1.bf16.msra.mxu0 0
    %1775 = vmatprep.subr.bf16.mxu0 0
    %1776 = vmatpush1.bf16.msra.mxu0 0
    %1777 = vmatprep.subr.bf16.mxu0 0
    %1778 = vmatpush1.bf16.msra.mxu0 0
    %1779 = vmatprep.subr.bf16.mxu0 0
    %1780 = vmatpush1.bf16.msra.mxu0 0
    %1781 = vmatprep.subr.bf16.mxu0 0
    %1782 = vmatpush1.bf16.msra.mxu0 0
    %1783 = vmatprep.subr.bf16.mxu0 0
    %1784 = vmatpush1.bf16.msra.mxu0 0
    %1785 = vmatprep.subr.bf16.mxu0 0
    %1786 = vmatpush1.bf16.msra.mxu0 0
    %1787 = vmatprep.subr.bf16.mxu0 0
    %1788 = vmatpush1.bf16.msra.mxu0 0
    %1789 = vmatprep.subr.bf16.mxu0 0
    %1790 = vmatpush1.bf16.msra.mxu0 0
    %1791 = vmatprep.subr.bf16.mxu0 0
    %1792 = vmatpush1.bf16.msra.mxu0 0
    %1793 = vmatprep.subr.bf16.mxu0 0
    %1794 = vmatpush1.bf16.msra.mxu0 0
    %1795 = vmatprep.subr.bf16.mxu0 0
    %1796 = vmatpush1.bf16.msra.mxu0 0
    %1797 = vmatprep.mubr.bf16.mxu0 0
    %1798 = vmatmul.mubr.bf16.gmra.mrb[0].mxu0 %v1403
    %v1799 = vpop.f32.mrb[0].mxu0
    %v1800 = vadd.f32 %v1687, %v1799
    %v1801 = vpop.f32.mrb[0].mxu0
    %v1802 = vadd.f32 %v1689, %v1801
    %v1803 = vpop.f32.mrb[0].mxu0
    %v1804 = vadd.f32 %v1691, %v1803
    %v1805 = vpop.f32.mrb[0].mxu0
    %v1806 = vadd.f32 %v1693, %v1805
    %1807 = vmatprep.mubr.bf16.mxu0 0
    %1808 = vmatmul.mubr.bf16.gmra.mrb[0].mxu0 %v1406
    %v1809 = vpop.f32.mrb[0].mxu0
    %v1810 = vadd.f32 %v1697, %v1809
    %v1811 = vpop.f32.mrb[0].mxu0
    %v1812 = vadd.f32 %v1699, %v1811
    %v1813 = vpop.f32.mrb[0].mxu0
    %v1814 = vadd.f32 %v1701, %v1813
    %v1815 = vpop.f32.mrb[0].mxu0
    %v1816 = vadd.f32 %v1703, %v1815
    %1817 = vmatprep.mubr.bf16.mxu0 0
    %1818 = vmatmul.mubr.bf16.gmra.mrb[0].mxu0 %v1409
    %v1819 = vpop.f32.mrb[0].mxu0
    %v1820 = vadd.f32 %v1707, %v1819
    %v1821 = vpop.f32.mrb[0].mxu0
    %v1822 = vadd.f32 %v1709, %v1821
    %v1823 = vpop.f32.mrb[0].mxu0
    %v1824 = vadd.f32 %v1711, %v1823
    %v1825 = vpop.f32.mrb[0].mxu0
    %v1826 = vadd.f32 %v1713, %v1825
    %1827 = vmatprep.mubr.bf16.mxu0 0
    %1828 = vmatmul.mubr.bf16.gmra.mrb[0].mxu0 %v1412
    %v1829 = vpop.f32.mrb[0].mxu0
    %v1830 = vadd.f32 %v1717, %v1829
    %v1831 = vpop.f32.mrb[0].mxu0
    %v1832 = vadd.f32 %v1719, %v1831
    %v1833 = vpop.f32.mrb[0].mxu0
    %v1834 = vadd.f32 %v1721, %v1833
    %v1835 = vpop.f32.mrb[0].mxu0
    %v1836 = vadd.f32 %v1723, %v1835
    %1837 = vmatprep.mubr.bf16.mxu0 0
    %1838 = vmatmul.mubr.bf16.gmra.mrb[0].mxu0 %v1415
    %v1839 = vpop.f32.mrb[0].mxu0
    %v1840 = vadd.f32 %v1727, %v1839
    %v1841 = vpop.f32.mrb[0].mxu0
    %v1842 = vadd.f32 %v1729, %v1841
    %v1843 = vpop.f32.mrb[0].mxu0
    %v1844 = vadd.f32 %v1731, %v1843
    %v1845 = vpop.f32.mrb[0].mxu0
    %v1846 = vadd.f32 %v1733, %v1845
    %1847 = vmatprep.mubr.bf16.mxu0 0
    %1848 = vmatmul.mubr.bf16.gmra.mrb[0].mxu0 %v1418
    %v1849 = vpop.f32.mrb[0].mxu0
    %v1850 = vadd.f32 %v1737, %v1849
    %v1851 = vpop.f32.mrb[0].mxu0
    %v1852 = vadd.f32 %v1739, %v1851
    %v1853 = vpop.f32.mrb[0].mxu0
    %v1854 = vadd.f32 %v1741, %v1853
    %v1855 = vpop.f32.mrb[0].mxu0
    %v1856 = vadd.f32 %v1743, %v1855
    %1857 = vmatprep.mubr.bf16.mxu0 0
    %1858 = vmatmul.mubr.bf16.gmra.mrb[0].mxu0 %v1421
    %v1859 = vpop.f32.mrb[0].mxu0
    %v1860 = vadd.f32 %v1747, %v1859
    %v1861 = vpop.f32.mrb[0].mxu0
    %v1862 = vadd.f32 %v1749, %v1861
    %v1863 = vpop.f32.mrb[0].mxu0
    %v1864 = vadd.f32 %v1751, %v1863
    %v1865 = vpop.f32.mrb[0].mxu0
    %v1866 = vadd.f32 %v1753, %v1865
    %1867 = vmatprep.mubr.bf16.mxu0 0
    %1868 = vmatmul.mubr.bf16.gmra.mrb[0].mxu0 %v1424
    %v1869 = vpop.f32.mrb[0].mxu0
    %v1870 = vadd.f32 %v1757, %v1869
    %v1871 = vpop.f32.mrb[0].mxu0
    %v1872 = vadd.f32 %v1759, %v1871
    %v1873 = vpop.f32.mrb[0].mxu0
    %v1874 = vadd.f32 %v1761, %v1873
    %v1875 = vpop.f32.mrb[0].mxu0
    %v1876 = vadd.f32 %v1763, %v1875
    %1877 = vdwg.mxu0
    %1878 = vmatprep.subr.bf16.mxu0 %v1012
    %1879 = vmatpush1.bf16.msra.mxu0 %v1011
    %1880 = vmatprep.subr.bf16.mxu0 %v1016
    %1881 = vmatpush1.bf16.msra.mxu0 %v1015
    %1882 = vmatprep.subr.bf16.mxu0 %v1020
    %1883 = vmatpush1.bf16.msra.mxu0 %v1019
    %1884 = vmatprep.subr.bf16.mxu0 %v1024
    %1885 = vmatpush1.bf16.msra.mxu0 %v1023
    %1886 = vmatprep.subr.bf16.mxu0 %v1028
    %1887 = vmatpush1.bf16.msra.mxu0 %v1027
    %1888 = vmatprep.subr.bf16.mxu0 %v1032
    %1889 = vmatpush1.bf16.msra.mxu0 %v1031
    %1890 = vmatprep.subr.bf16.mxu0 %v1036
    %1891 = vmatpush1.bf16.msra.mxu0 %v1035
    %1892 = vmatprep.subr.bf16.mxu0 %v1040
    %1893 = vmatpush1.bf16.msra.mxu0 %v1039
    %1894 = vmatprep.subr.bf16.mxu0 %v1044
    %1895 = vmatpush1.bf16.msra.mxu0 %v1043
    %1896 = vmatprep.subr.bf16.mxu0 %v1048
    %1897 = vmatpush1.bf16.msra.mxu0 %v1047
    %1898 = vmatprep.subr.bf16.mxu0 %v1052
    %1899 = vmatpush1.bf16.msra.mxu0 %v1051
    %1900 = vmatprep.subr.bf16.mxu0 %v1056
    %1901 = vmatpush1.bf16.msra.mxu0 %v1055
    %1902 = vmatprep.subr.bf16.mxu0 %v1060
    %1903 = vmatpush1.bf16.msra.mxu0 %v1059
    %1904 = vmatprep.subr.bf16.mxu0 %v1064
    %1905 = vmatpush1.bf16.msra.mxu0 %v1063
    %1906 = vmatprep.subr.bf16.mxu0 %v1068
    %1907 = vmatpush1.bf16.msra.mxu0 %v1067
    %1908 = vmatprep.subr.bf16.mxu0 %v1072
    %1909 = vmatpush1.bf16.msra.mxu0 %v1071
    %1910 = vmatprep.mubr.bf16.mxu0 %v148
    %1911 = vmatmul.mubr.bf16.gmra.mrb[0].mxu0 %v147
    %v1912 = vpop.f32.mrb[0].mxu0
    %v1913 = vadd.f32 %v412, %v1912
    %v1914 = vpop.f32.mrb[0].mxu0
    %v1915 = vadd.f32 %v416, %v1914
    %v1916 = vpop.f32.mrb[0].mxu0
    %v1917 = vadd.f32 %v412, %v1916
    %v1918 = vpop.f32.mrb[0].mxu0
    %v1919 = vadd.f32 %v416, %v1918
    %1920 = vmatprep.mubr.bf16.mxu0 %v155
    %1921 = vmatmul.mubr.bf16.gmra.mrb[0].mxu0 %v154
    %v1922 = vpop.f32.mrb[0].mxu0
    %v1923 = vadd.f32 %v412, %v1922
    %v1924 = vpop.f32.mrb[0].mxu0
    %v1925 = vadd.f32 %v416, %v1924
    %v1926 = vpop.f32.mrb[0].mxu0
    %v1927 = vadd.f32 %v412, %v1926
    %v1928 = vpop.f32.mrb[0].mxu0
    %v1929 = vadd.f32 %v416, %v1928
    %1930 = vmatprep.mubr.bf16.mxu0 %v162
    %1931 = vmatmul.mubr.bf16.gmra.mrb[0].mxu0 %v161
    %v1932 = vpop.f32.mrb[0].mxu0
    %v1933 = vadd.f32 %v412, %v1932
    %v1934 = vpop.f32.mrb[0].mxu0
    %v1935 = vadd.f32 %v416, %v1934
    %v1936 = vpop.f32.mrb[0].mxu0
    %v1937 = vadd.f32 %v412, %v1936
    %v1938 = vpop.f32.mrb[0].mxu0
    %v1939 = vadd.f32 %v416, %v1938
    %1940 = vmatprep.mubr.bf16.mxu0 %v169
    %1941 = vmatmul.mubr.bf16.gmra.mrb[0].mxu0 %v168
    %v1942 = vpop.f32.mrb[0].mxu0
    %v1943 = vadd.f32 %v412, %v1942
    %v1944 = vpop.f32.mrb[0].mxu0
    %v1945 = vadd.f32 %v416, %v1944
    %v1946 = vpop.f32.mrb[0].mxu0
    %v1947 = vadd.f32 %v412, %v1946
    %v1948 = vpop.f32.mrb[0].mxu0
    %v1949 = vadd.f32 %v416, %v1948
    %1950 = vmatprep.mubr.bf16.mxu0 %v176
    %1951 = vmatmul.mubr.bf16.gmra.mrb[0].mxu0 %v175
    %v1952 = vpop.f32.mrb[0].mxu0
    %v1953 = vadd.f32 %v412, %v1952
    %v1954 = vpop.f32.mrb[0].mxu0
    %v1955 = vadd.f32 %v416, %v1954
    %v1956 = vpop.f32.mrb[0].mxu0
    %v1957 = vadd.f32 %v412, %v1956
    %v1958 = vpop.f32.mrb[0].mxu0
    %v1959 = vadd.f32 %v416, %v1958
    %1960 = vmatprep.mubr.bf16.mxu0 %v183
    %1961 = vmatmul.mubr.bf16.gmra.mrb[0].mxu0 %v182
    %v1962 = vpop.f32.mrb[0].mxu0
    %v1963 = vadd.f32 %v412, %v1962
    %v1964 = vpop.f32.mrb[0].mxu0
    %v1965 = vadd.f32 %v416, %v1964
    %v1966 = vpop.f32.mrb[0].mxu0
    %v1967 = vadd.f32 %v412, %v1966
    %v1968 = vpop.f32.mrb[0].mxu0
    %v1969 = vadd.f32 %v416, %v1968
    %1970 = vmatprep.mubr.bf16.mxu0 %v190
    %1971 = vmatmul.mubr.bf16.gmra.mrb[0].mxu0 %v189
    %v1972 = vpop.f32.mrb[0].mxu0
    %v1973 = vadd.f32 %v412, %v1972
    %v1974 = vpop.f32.mrb[0].mxu0
    %v1975 = vadd.f32 %v416, %v1974
    %v1976 = vpop.f32.mrb[0].mxu0
    %v1977 = vadd.f32 %v412, %v1976
    %v1978 = vpop.f32.mrb[0].mxu0
    %v1979 = vadd.f32 %v416, %v1978
    %1980 = vmatprep.mubr.bf16.mxu0 %v197
    %1981 = vmatmul.mubr.bf16.gmra.mrb[0].mxu0 %v196
    %v1982 = vpop.f32.mrb[0].mxu0
    %v1983 = vadd.f32 %v412, %v1982
    %v1984 = vpop.f32.mrb[0].mxu0
    %v1985 = vadd.f32 %v416, %v1984
    %v1986 = vpop.f32.mrb[0].mxu0
    %v1987 = vadd.f32 %v412, %v1986
    %v1988 = vpop.f32.mrb[0].mxu0
    %v1989 = vadd.f32 %v416, %v1988
    %1990 = vdwg.mxu0
    %1991 = vmatprep.subr.bf16.mxu0 %v1076
    %1992 = vmatpush1.bf16.msra.mxu0 %v1075
    %1993 = vmatprep.subr.bf16.mxu0 %v1080
    %1994 = vmatpush1.bf16.msra.mxu0 %v1079
    %1995 = vmatprep.subr.bf16.mxu0 %v1084
    %1996 = vmatpush1.bf16.msra.mxu0 %v1083
    %1997 = vmatprep.subr.bf16.mxu0 %v1088
    %1998 = vmatpush1.bf16.msra.mxu0 %v1087
    %1999 = vmatprep.subr.bf16.mxu0 %v1092
    %2000 = vmatpush1.bf16.msra.mxu0 %v1091
    %2001 = vmatprep.subr.bf16.mxu0 %v1096
    %2002 = vmatpush1.bf16.msra.mxu0 %v1095
    %2003 = vmatprep.subr.bf16.mxu0 %v1100
    %2004 = vmatpush1.bf16.msra.mxu0 %v1099
    %2005 = vmatprep.subr.bf16.mxu0 %v1104
    %2006 = vmatpush1.bf16.msra.mxu0 %v1103
    %2007 = vmatprep.subr.bf16.mxu0 %v1108
    %2008 = vmatpush1.bf16.msra.mxu0 %v1107
    %2009 = vmatprep.subr.bf16.mxu0 %v1112
    %2010 = vmatpush1.bf16.msra.mxu0 %v1111
    %2011 = vmatprep.subr.bf16.mxu0 %v1116
    %2012 = vmatpush1.bf16.msra.mxu0 %v1115
    %2013 = vmatprep.subr.bf16.mxu0 %v1120
    %2014 = vmatpush1.bf16.msra.mxu0 %v1119
    %2015 = vmatprep.subr.bf16.mxu0 %v1124
    %2016 = vmatpush1.bf16.msra.mxu0 %v1123
    %2017 = vmatprep.subr.bf16.mxu0 %v1128
    %2018 = vmatpush1.bf16.msra.mxu0 %v1127
    %2019 = vmatprep.subr.bf16.mxu0 %v1132
    %2020 = vmatpush1.bf16.msra.mxu0 %v1131
    %2021 = vmatprep.subr.bf16.mxu0 %v1136
    %2022 = vmatpush1.bf16.msra.mxu0 %v1135
    %2023 = vmatprep.mubr.bf16.mxu0 %v150
    %2024 = vmatmul.mubr.bf16.gmra.mrb[0].mxu0 %v149
    %v2025 = vpop.f32.mrb[0].mxu0
    %v2026 = vadd.f32 %v1913, %v2025
    %v2027 = vpop.f32.mrb[0].mxu0
    %v2028 = vadd.f32 %v1915, %v2027
    %v2029 = vpop.f32.mrb[0].mxu0
    %v2030 = vadd.f32 %v1917, %v2029
    %v2031 = vpop.f32.mrb[0].mxu0
    %v2032 = vadd.f32 %v1919, %v2031
    %2033 = vmatprep.mubr.bf16.mxu0 %v157
    %2034 = vmatmul.mubr.bf16.gmra.mrb[0].mxu0 %v156
    %v2035 = vpop.f32.mrb[0].mxu0
    %v2036 = vadd.f32 %v1923, %v2035
    %v2037 = vpop.f32.mrb[0].mxu0
    %v2038 = vadd.f32 %v1925, %v2037
    %v2039 = vpop.f32.mrb[0].mxu0
    %v2040 = vadd.f32 %v1927, %v2039
    %v2041 = vpop.f32.mrb[0].mxu0
    %v2042 = vadd.f32 %v1929, %v2041
    %2043 = vmatprep.mubr.bf16.mxu0 %v164
    %2044 = vmatmul.mubr.bf16.gmra.mrb[0].mxu0 %v163
    %v2045 = vpop.f32.mrb[0].mxu0
    %v2046 = vadd.f32 %v1933, %v2045
    %v2047 = vpop.f32.mrb[0].mxu0
    %v2048 = vadd.f32 %v1935, %v2047
    %v2049 = vpop.f32.mrb[0].mxu0
    %v2050 = vadd.f32 %v1937, %v2049
    %v2051 = vpop.f32.mrb[0].mxu0
    %v2052 = vadd.f32 %v1939, %v2051
    %2053 = vmatprep.mubr.bf16.mxu0 %v171
    %2054 = vmatmul.mubr.bf16.gmra.mrb[0].mxu0 %v170
    %v2055 = vpop.f32.mrb[0].mxu0
    %v2056 = vadd.f32 %v1943, %v2055
    %v2057 = vpop.f32.mrb[0].mxu0
    %v2058 = vadd.f32 %v1945, %v2057
    %v2059 = vpop.f32.mrb[0].mxu0
    %v2060 = vadd.f32 %v1947, %v2059
    %v2061 = vpop.f32.mrb[0].mxu0
    %v2062 = vadd.f32 %v1949, %v2061
    %2063 = vmatprep.mubr.bf16.mxu0 %v178
    %2064 = vmatmul.mubr.bf16.gmra.mrb[0].mxu0 %v177
    %v2065 = vpop.f32.mrb[0].mxu0
    %v2066 = vadd.f32 %v1953, %v2065
    %v2067 = vpop.f32.mrb[0].mxu0
    %v2068 = vadd.f32 %v1955, %v2067
    %v2069 = vpop.f32.mrb[0].mxu0
    %v2070 = vadd.f32 %v1957, %v2069
    %v2071 = vpop.f32.mrb[0].mxu0
    %v2072 = vadd.f32 %v1959, %v2071
    %2073 = vmatprep.mubr.bf16.mxu0 %v185
    %2074 = vmatmul.mubr.bf16.gmra.mrb[0].mxu0 %v184
    %v2075 = vpop.f32.mrb[0].mxu0
    %v2076 = vadd.f32 %v1963, %v2075
    %v2077 = vpop.f32.mrb[0].mxu0
    %v2078 = vadd.f32 %v1965, %v2077
    %v2079 = vpop.f32.mrb[0].mxu0
    %v2080 = vadd.f32 %v1967, %v2079
    %v2081 = vpop.f32.mrb[0].mxu0
    %v2082 = vadd.f32 %v1969, %v2081
    %2083 = vmatprep.mubr.bf16.mxu0 %v192
    %2084 = vmatmul.mubr.bf16.gmra.mrb[0].mxu0 %v191
    %v2085 = vpop.f32.mrb[0].mxu0
    %v2086 = vadd.f32 %v1973, %v2085
    %v2087 = vpop.f32.mrb[0].mxu0
    %v2088 = vadd.f32 %v1975, %v2087
    %v2089 = vpop.f32.mrb[0].mxu0
    %v2090 = vadd.f32 %v1977, %v2089
    %v2091 = vpop.f32.mrb[0].mxu0
    %v2092 = vadd.f32 %v1979, %v2091
    %2093 = vmatprep.mubr.bf16.mxu0 %v199
    %2094 = vmatmul.mubr.bf16.gmra.mrb[0].mxu0 %v198
    %v2095 = vpop.f32.mrb[0].mxu0
    %v2096 = vadd.f32 %v1983, %v2095
    %v2097 = vpop.f32.mrb[0].mxu0
    %v2098 = vadd.f32 %v1985, %v2097
    %v2099 = vpop.f32.mrb[0].mxu0
    %v2100 = vadd.f32 %v1987, %v2099
    %v2101 = vpop.f32.mrb[0].mxu0
    %v2102 = vadd.f32 %v1989, %v2101
    %2103 = vdwg.mxu0
    %2104 = vmatprep.subr.bf16.mxu0 %v1140
    %2105 = vmatpush1.bf16.msra.mxu0 %v1139
    %2106 = vmatprep.subr.bf16.mxu0 %v1144
    %2107 = vmatpush1.bf16.msra.mxu0 %v1143
    %2108 = vmatprep.subr.bf16.mxu0 %v1148
    %2109 = vmatpush1.bf16.msra.mxu0 %v1147
    %2110 = vmatprep.subr.bf16.mxu0 %v1152
    %2111 = vmatpush1.bf16.msra.mxu0 %v1151
    %2112 = vmatprep.subr.bf16.mxu0 %v1156
    %2113 = vmatpush1.bf16.msra.mxu0 %v1155
    %2114 = vmatprep.subr.bf16.mxu0 %v1160
    %2115 = vmatpush1.bf16.msra.mxu0 %v1159
    %2116 = vmatprep.subr.bf16.mxu0 %v1164
    %2117 = vmatpush1.bf16.msra.mxu0 %v1163
    %2118 = vmatprep.subr.bf16.mxu0 %v1168
    %2119 = vmatpush1.bf16.msra.mxu0 %v1167
    %2120 = vmatprep.subr.bf16.mxu0 %v1172
    %2121 = vmatpush1.bf16.msra.mxu0 %v1171
    %2122 = vmatprep.subr.bf16.mxu0 %v1176
    %2123 = vmatpush1.bf16.msra.mxu0 %v1175
    %2124 = vmatprep.subr.bf16.mxu0 %v1180
    %2125 = vmatpush1.bf16.msra.mxu0 %v1179
    %2126 = vmatprep.subr.bf16.mxu0 %v1184
    %2127 = vmatpush1.bf16.msra.mxu0 %v1183
    %2128 = vmatprep.subr.bf16.mxu0 %v1188
    %2129 = vmatpush1.bf16.msra.mxu0 %v1187
    %2130 = vmatprep.subr.bf16.mxu0 %v1192
    %2131 = vmatpush1.bf16.msra.mxu0 %v1191
    %2132 = vmatprep.subr.bf16.mxu0 %v1196
    %2133 = vmatpush1.bf16.msra.mxu0 %v1195
    %2134 = vmatprep.subr.bf16.mxu0 %v1200
    %2135 = vmatpush1.bf16.msra.mxu0 %v1199
    %2136 = vmatprep.mubr.bf16.mxu0 %v152
    %2137 = vmatmul.mubr.bf16.gmra.mrb[0].mxu0 %v151
    %v2138 = vpop.f32.mrb[0].mxu0
    %v2139 = vadd.f32 %v2026, %v2138
    %v2140 = vpop.f32.mrb[0].mxu0
    %v2141 = vadd.f32 %v2028, %v2140
    %v2142 = vpop.f32.mrb[0].mxu0
    %v2143 = vadd.f32 %v2030, %v2142
    %v2144 = vpop.f32.mrb[0].mxu0
    %v2145 = vadd.f32 %v2032, %v2144
    %2146 = vmatprep.mubr.bf16.mxu0 %v159
    %2147 = vmatmul.mubr.bf16.gmra.mrb[0].mxu0 %v158
    %v2148 = vpop.f32.mrb[0].mxu0
    %v2149 = vadd.f32 %v2036, %v2148
    %v2150 = vpop.f32.mrb[0].mxu0
    %v2151 = vadd.f32 %v2038, %v2150
    %v2152 = vpop.f32.mrb[0].mxu0
    %v2153 = vadd.f32 %v2040, %v2152
    %v2154 = vpop.f32.mrb[0].mxu0
    %v2155 = vadd.f32 %v2042, %v2154
    %2156 = vmatprep.mubr.bf16.mxu0 %v166
    %2157 = vmatmul.mubr.bf16.gmra.mrb[0].mxu0 %v165
    %v2158 = vpop.f32.mrb[0].mxu0
    %v2159 = vadd.f32 %v2046, %v2158
    %v2160 = vpop.f32.mrb[0].mxu0
    %v2161 = vadd.f32 %v2048, %v2160
    %v2162 = vpop.f32.mrb[0].mxu0
    %v2163 = vadd.f32 %v2050, %v2162
    %v2164 = vpop.f32.mrb[0].mxu0
    %v2165 = vadd.f32 %v2052, %v2164
    %2166 = vmatprep.mubr.bf16.mxu0 %v173
    %2167 = vmatmul.mubr.bf16.gmra.mrb[0].mxu0 %v172
    %v2168 = vpop.f32.mrb[0].mxu0
    %v2169 = vadd.f32 %v2056, %v2168
    %v2170 = vpop.f32.mrb[0].mxu0
    %v2171 = vadd.f32 %v2058, %v2170
    %v2172 = vpop.f32.mrb[0].mxu0
    %v2173 = vadd.f32 %v2060, %v2172
    %v2174 = vpop.f32.mrb[0].mxu0
    %v2175 = vadd.f32 %v2062, %v2174
    %2176 = vmatprep.mubr.bf16.mxu0 %v180
    %2177 = vmatmul.mubr.bf16.gmra.mrb[0].mxu0 %v179
    %v2178 = vpop.f32.mrb[0].mxu0
    %v2179 = vadd.f32 %v2066, %v2178
    %v2180 = vpop.f32.mrb[0].mxu0
    %v2181 = vadd.f32 %v2068, %v2180
    %v2182 = vpop.f32.mrb[0].mxu0
    %v2183 = vadd.f32 %v2070, %v2182
    %v2184 = vpop.f32.mrb[0].mxu0
    %v2185 = vadd.f32 %v2072, %v2184
    %2186 = vmatprep.mubr.bf16.mxu0 %v187
    %2187 = vmatmul.mubr.bf16.gmra.mrb[0].mxu0 %v186
    %v2188 = vpop.f32.mrb[0].mxu0
    %v2189 = vadd.f32 %v2076, %v2188
    %v2190 = vpop.f32.mrb[0].mxu0
    %v2191 = vadd.f32 %v2078, %v2190
    %v2192 = vpop.f32.mrb[0].mxu0
    %v2193 = vadd.f32 %v2080, %v2192
    %v2194 = vpop.f32.mrb[0].mxu0
    %v2195 = vadd.f32 %v2082, %v2194
    %2196 = vmatprep.mubr.bf16.mxu0 %v194
    %2197 = vmatmul.mubr.bf16.gmra.mrb[0].mxu0 %v193
    %v2198 = vpop.f32.mrb[0].mxu0
    %v2199 = vadd.f32 %v2086, %v2198
    %v2200 = vpop.f32.mrb[0].mxu0
    %v2201 = vadd.f32 %v2088, %v2200
    %v2202 = vpop.f32.mrb[0].mxu0
    %v2203 = vadd.f32 %v2090, %v2202
    %v2204 = vpop.f32.mrb[0].mxu0
    %v2205 = vadd.f32 %v2092, %v2204
    %2206 = vmatprep.mubr.bf16.mxu0 %v201
    %2207 = vmatmul.mubr.bf16.gmra.mrb[0].mxu0 %v200
    %v2208 = vpop.f32.mrb[0].mxu0
    %v2209 = vadd.f32 %v2096, %v2208
    %v2210 = vpop.f32.mrb[0].mxu0
    %v2211 = vadd.f32 %v2098, %v2210
    %v2212 = vpop.f32.mrb[0].mxu0
    %v2213 = vadd.f32 %v2100, %v2212
    %v2214 = vpop.f32.mrb[0].mxu0
    %v2215 = vadd.f32 %v2102, %v2214
    %2216 = vdwg.mxu0
    %2217 = vmatprep.subr.bf16.mxu0 %v1204
    %2218 = vmatpush1.bf16.msra.mxu0 %v1203
    %2219 = vmatprep.subr.bf16.mxu0 0
    %2220 = vmatpush1.bf16.msra.mxu0 0
    %2221 = vmatprep.subr.bf16.mxu0 0
    %2222 = vmatpush1.bf16.msra.mxu0 0
    %2223 = vmatprep.subr.bf16.mxu0 0
    %2224 = vmatpush1.bf16.msra.mxu0 0
    %2225 = vmatprep.subr.bf16.mxu0 0
    %2226 = vmatpush1.bf16.msra.mxu0 0
    %2227 = vmatprep.subr.bf16.mxu0 0
    %2228 = vmatpush1.bf16.msra.mxu0 0
    %2229 = vmatprep.subr.bf16.mxu0 0
    %2230 = vmatpush1.bf16.msra.mxu0 0
    %2231 = vmatprep.subr.bf16.mxu0 0
    %2232 = vmatpush1.bf16.msra.mxu0 0
    %2233 = vmatprep.subr.bf16.mxu0 0
    %2234 = vmatpush1.bf16.msra.mxu0 0
    %2235 = vmatprep.subr.bf16.mxu0 0
    %2236 = vmatpush1.bf16.msra.mxu0 0
    %2237 = vmatprep.subr.bf16.mxu0 0
    %2238 = vmatpush1.bf16.msra.mxu0 0
    %2239 = vmatprep.subr.bf16.mxu0 0
    %2240 = vmatpush1.bf16.msra.mxu0 0
    %2241 = vmatprep.subr.bf16.mxu0 0
    %2242 = vmatpush1.bf16.msra.mxu0 0
    %2243 = vmatprep.subr.bf16.mxu0 0
    %2244 = vmatpush1.bf16.msra.mxu0 0
    %2245 = vmatprep.subr.bf16.mxu0 0
    %2246 = vmatpush1.bf16.msra.mxu0 0
    %2247 = vmatprep.subr.bf16.mxu0 0
    %2248 = vmatpush1.bf16.msra.mxu0 0
    %2249 = vmatprep.mubr.bf16.mxu0 0
    %2250 = vmatmul.mubr.bf16.gmra.mrb[0].mxu0 %v1403
    %v2251 = vpop.f32.mrb[0].mxu0
    %v2252 = vadd.f32 %v2139, %v2251
    %v2253 = vpop.f32.mrb[0].mxu0
    %v2254 = vadd.f32 %v2141, %v2253
    %v2255 = vpop.f32.mrb[0].mxu0
    %v2256 = vadd.f32 %v2143, %v2255
    %v2257 = vpop.f32.mrb[0].mxu0
    %v2258 = vadd.f32 %v2145, %v2257
    %2259 = vmatprep.mubr.bf16.mxu0 0
    %2260 = vmatmul.mubr.bf16.gmra.mrb[0].mxu0 %v1406
    %v2261 = vpop.f32.mrb[0].mxu0
    %v2262 = vadd.f32 %v2149, %v2261
    %v2263 = vpop.f32.mrb[0].mxu0
    %v2264 = vadd.f32 %v2151, %v2263
    %v2265 = vpop.f32.mrb[0].mxu0
    %v2266 = vadd.f32 %v2153, %v2265
    %v2267 = vpop.f32.mrb[0].mxu0
    %v2268 = vadd.f32 %v2155, %v2267
    %2269 = vmatprep.mubr.bf16.mxu0 0
    %2270 = vmatmul.mubr.bf16.gmra.mrb[0].mxu0 %v1409
    %v2271 = vpop.f32.mrb[0].mxu0
    %v2272 = vadd.f32 %v2159, %v2271
    %v2273 = vpop.f32.mrb[0].mxu0
    %v2274 = vadd.f32 %v2161, %v2273
    %v2275 = vpop.f32.mrb[0].mxu0
    %v2276 = vadd.f32 %v2163, %v2275
    %v2277 = vpop.f32.mrb[0].mxu0
    %v2278 = vadd.f32 %v2165, %v2277
    %2279 = vmatprep.mubr.bf16.mxu0 0
    %2280 = vmatmul.mubr.bf16.gmra.mrb[0].mxu0 %v1412
    %v2281 = vpop.f32.mrb[0].mxu0
    %v2282 = vadd.f32 %v2169, %v2281
    %v2283 = vpop.f32.mrb[0].mxu0
    %v2284 = vadd.f32 %v2171, %v2283
    %v2285 = vpop.f32.mrb[0].mxu0
    %v2286 = vadd.f32 %v2173, %v2285
    %v2287 = vpop.f32.mrb[0].mxu0
    %v2288 = vadd.f32 %v2175, %v2287
    %2289 = vmatprep.mubr.bf16.mxu0 0
    %2290 = vmatmul.mubr.bf16.gmra.mrb[0].mxu0 %v1415
    %v2291 = vpop.f32.mrb[0].mxu0
    %v2292 = vadd.f32 %v2179, %v2291
    %v2293 = vpop.f32.mrb[0].mxu0
    %v2294 = vadd.f32 %v2181, %v2293
    %v2295 = vpop.f32.mrb[0].mxu0
    %v2296 = vadd.f32 %v2183, %v2295
    %v2297 = vpop.f32.mrb[0].mxu0
    %v2298 = vadd.f32 %v2185, %v2297
    %2299 = vmatprep.mubr.bf16.mxu0 0
    %2300 = vmatmul.mubr.bf16.gmra.mrb[0].mxu0 %v1418
    %v2301 = vpop.f32.mrb[0].mxu0
    %v2302 = vadd.f32 %v2189, %v2301
    %v2303 = vpop.f32.mrb[0].mxu0
    %v2304 = vadd.f32 %v2191, %v2303
    %v2305 = vpop.f32.mrb[0].mxu0
    %v2306 = vadd.f32 %v2193, %v2305
    %v2307 = vpop.f32.mrb[0].mxu0
    %v2308 = vadd.f32 %v2195, %v2307
    %2309 = vmatprep.mubr.bf16.mxu0 0
    %2310 = vmatmul.mubr.bf16.gmra.mrb[0].mxu0 %v1421
    %v2311 = vpop.f32.mrb[0].mxu0
    %v2312 = vadd.f32 %v2199, %v2311
    %v2313 = vpop.f32.mrb[0].mxu0
    %v2314 = vadd.f32 %v2201, %v2313
    %v2315 = vpop.f32.mrb[0].mxu0
    %v2316 = vadd.f32 %v2203, %v2315
    %v2317 = vpop.f32.mrb[0].mxu0
    %v2318 = vadd.f32 %v2205, %v2317
    %2319 = vmatprep.mubr.bf16.mxu0 0
    %2320 = vmatmul.mubr.bf16.gmra.mrb[0].mxu0 %v1424
    %v2321 = vpop.f32.mrb[0].mxu0
    %v2322 = vadd.f32 %v2209, %v2321
    %v2323 = vpop.f32.mrb[0].mxu0
    %v2324 = vadd.f32 %v2211, %v2323
    %v2325 = vpop.f32.mrb[0].mxu0
    %v2326 = vadd.f32 %v2213, %v2325
    %v2327 = vpop.f32.mrb[0].mxu0
    %v2328 = vadd.f32 %v2215, %v2327
    %2329 = vdwg.mxu0
    %v2330 = vmax.f32 %v1800, 0.0
    %v2331 = vmax.f32 %v1802, 0.0
    %v2332 = vmax.f32 %v2252, 0.0
    %v2333 = vmax.f32 %v2254, 0.0
    %v2334 = vmax.f32 %v1804, 0.0
    %v2335 = vmax.f32 %v1806, 0.0
    %v2336 = vmax.f32 %v2256, 0.0
    %v2337 = vmax.f32 %v2258, 0.0
    %v2338 = vmax.f32 %v1810, 0.0
    %v2339 = vmax.f32 %v1812, 0.0
    %v2340 = vmax.f32 %v2262, 0.0
    %v2341 = vmax.f32 %v2264, 0.0
    %v2342 = vmax.f32 %v1814, 0.0
    %v2343 = vmax.f32 %v1816, 0.0
    %v2344 = vmax.f32 %v2266, 0.0
    %v2345 = vmax.f32 %v2268, 0.0
    %v2346 = vmax.f32 %v1820, 0.0
    %v2347 = vmax.f32 %v1822, 0.0
    %v2348 = vmax.f32 %v2272, 0.0
    %v2349 = vmax.f32 %v2274, 0.0
    %v2350 = vmax.f32 %v1824, 0.0
    %v2351 = vmax.f32 %v1826, 0.0
    %v2352 = vmax.f32 %v2276, 0.0
    %v2353 = vmax.f32 %v2278, 0.0
    %v2354 = vmax.f32 %v1830, 0.0
    %v2355 = vmax.f32 %v1832, 0.0
    %v2356 = vmax.f32 %v2282, 0.0
    %v2357 = vmax.f32 %v2284, 0.0
    %v2358 = vmax.f32 %v1834, 0.0
    %v2359 = vmax.f32 %v1836, 0.0
    %v2360 = vmax.f32 %v2286, 0.0
    %v2361 = vmax.f32 %v2288, 0.0
    %v2362 = vmax.f32 %v1840, 0.0
    %v2363 = vmax.f32 %v1842, 0.0
    %v2364 = vmax.f32 %v2292, 0.0
    %v2365 = vmax.f32 %v2294, 0.0
    %v2366 = vmax.f32 %v1844, 0.0
    %v2367 = vmax.f32 %v1846, 0.0
    %v2368 = vmax.f32 %v2296, 0.0
    %v2369 = vmax.f32 %v2298, 0.0
    %v2370 = vmax.f32 %v1850, 0.0
    %v2371 = vmax.f32 %v1852, 0.0
    %v2372 = vmax.f32 %v2302, 0.0
    %v2373 = vmax.f32 %v2304, 0.0
    %v2374 = vmax.f32 %v1854, 0.0
    %v2375 = vmax.f32 %v1856, 0.0
    %v2376 = vmax.f32 %v2306, 0.0
    %v2377 = vmax.f32 %v2308, 0.0
    %v2378 = vmax.f32 %v1860, 0.0
    %v2379 = vmax.f32 %v1862, 0.0
    %v2380 = vmax.f32 %v2312, 0.0
    %v2381 = vmax.f32 %v2314, 0.0
    %v2382 = vmax.f32 %v1864, 0.0
    %v2383 = vmax.f32 %v1866, 0.0
    %v2384 = vmax.f32 %v2316, 0.0
    %v2385 = vmax.f32 %v2318, 0.0
    %v2386 = vmax.f32 %v1870, 0.0
    %v2387 = vmax.f32 %v1872, 0.0
    %v2388 = vmax.f32 %v2322, 0.0
    %v2389 = vmax.f32 %v2324, 0.0
    %v2390 = vmax.f32 %v1874, 0.0
    %v2391 = vmax.f32 %v1876, 0.0
    %v2392 = vmax.f32 %v2326, 0.0
    %v2393 = vmax.f32 %v2328, 0.0
    %v2394 = vpack.c.bf16 %v2334, %v2330
    %v2395 = vpack.c.bf16 %v2335, %v2331
    %v2396 = vpack.c.bf16 %v2336, %v2332
    %v2397 = vpack.c.bf16 %v2337, %v2333
    %v2398 = vpack.c.bf16 %v2342, %v2338
    %v2399 = vpack.c.bf16 %v2343, %v2339
    %v2400 = vpack.c.bf16 %v2344, %v2340
    %v2401 = vpack.c.bf16 %v2345, %v2341
    %v2402 = vpack.c.bf16 %v2350, %v2346
    %v2403 = vpack.c.bf16 %v2351, %v2347
    %v2404 = vpack.c.bf16 %v2352, %v2348
    %v2405 = vpack.c.bf16 %v2353, %v2349
    %v2406 = vpack.c.bf16 %v2358, %v2354
    %v2407 = vpack.c.bf16 %v2359, %v2355
    %v2408 = vpack.c.bf16 %v2360, %v2356
    %v2409 = vpack.c.bf16 %v2361, %v2357
    %v2410 = vpack.c.bf16 %v2366, %v2362
    %v2411 = vpack.c.bf16 %v2367, %v2363
    %v2412 = vpack.c.bf16 %v2368, %v2364
    %v2413 = vpack.c.bf16 %v2369, %v2365
    %v2414 = vpack.c.bf16 %v2374, %v2370
    %v2415 = vpack.c.bf16 %v2375, %v2371
    %v2416 = vpack.c.bf16 %v2376, %v2372
    %v2417 = vpack.c.bf16 %v2377, %v2373
    %v2418 = vpack.c.bf16 %v2382, %v2378
    %v2419 = vpack.c.bf16 %v2383, %v2379
    %v2420 = vpack.c.bf16 %v2384, %v2380
    %v2421 = vpack.c.bf16 %v2385, %v2381
    %v2422 = vpack.c.bf16 %v2390, %v2386
    %v2423 = vpack.c.bf16 %v2391, %v2387
    %v2424 = vpack.c.bf16 %v2392, %v2388
    %v2425 = vpack.c.bf16 %v2393, %v2389
    %v2426 = vld [vmem:[#allocation2] sm:$0xf]
    %v2427 = vld [vmem:[#allocation2 + $0x4] sm:$0xf]
    %v2428 = vld [vmem:[#allocation2 + $0x8] sm:$0xf]
    %v2429 = vld [vmem:[#allocation2 + $0xc] sm:$0xf]
    %v2430 = vld [vmem:[#allocation2 + $0x10] sm:$0xf]
    %v2431 = vld [vmem:[#allocation2 + $0x14] sm:$0xf]
    %v2432 = vld [vmem:[#allocation2 + $0x18] sm:$0xf]
    %v2433 = vld [vmem:[#allocation2 + $0x1c] sm:$0xf]
    %v2434 = vld [vmem:[#allocation2 + $0x20] sm:$0xf]
    %v2435 = vld [vmem:[#allocation2 + $0x24] sm:$0xf]
    %v2436 = vld [vmem:[#allocation2 + $0x28] sm:$0xf]
    %v2437 = vld [vmem:[#allocation2 + $0x2c] sm:$0xf]
    %v2438 = vld [vmem:[#allocation2 + $0x30] sm:$0xf]
    %v2439 = vld [vmem:[#allocation2 + $0x34] sm:$0xf]
    %v2440 = vld [vmem:[#allocation2 + $0x38] sm:$0xf]
    %v2441 = vld [vmem:[#allocation2 + $0x3c] sm:$0xf]
    %v2442 = vld [vmem:[#allocation2 + $0x40] sm:$0xf]
    %v2443 = vld [vmem:[#allocation2 + $0x44] sm:$0xf]
    %v2444 = vld [vmem:[#allocation2 + $0x48] sm:$0xf]
    %v2445 = vld [vmem:[#allocation2 + $0x4c] sm:$0xf]
    %v2446 = vld [vmem:[#allocation2 + $0x50] sm:$0xf]
    %v2447 = vld [vmem:[#allocation2 + $0x54] sm:$0xf]
    %v2448 = vld [vmem:[#allocation2 + $0x58] sm:$0xf]
    %v2449 = vld [vmem:[#allocation2 + $0x5c] sm:$0xf]
    %v2450 = vld [vmem:[#allocation2 + $0x60] sm:$0xf]
    %v2451 = vld [vmem:[#allocation2 + $0x64] sm:$0xf]
    %v2452 = vld [vmem:[#allocation2 + $0x68] sm:$0xf]
    %v2453 = vld [vmem:[#allocation2 + $0x6c] sm:$0xf]
    %v2454 = vld [vmem:[#allocation2 + $0x70] sm:$0xf]
    %v2455 = vld [vmem:[#allocation2 + $0x74] sm:$0xf]
    %v2456 = vld [vmem:[#allocation2 + $0x78] sm:$0xf]
    %v2457 = vld [vmem:[#allocation2 + $0x7c] sm:$0xf]
    %v2458 = vld [vmem:[#allocation2 + $0x80] sm:$0xf]
    %v2459 = vld [vmem:[#allocation2 + $0x84] sm:$0xf]
    %v2460 = vld [vmem:[#allocation2 + $0x88] sm:$0xf]
    %v2461 = vld [vmem:[#allocation2 + $0x8c] sm:$0xf]
    %v2462 = vld [vmem:[#allocation2 + $0x90] sm:$0xf]
    %v2463 = vld [vmem:[#allocation2 + $0x94] sm:$0xf]
    %v2464 = vld [vmem:[#allocation2 + $0x98] sm:$0xf]
    %v2465 = vld [vmem:[#allocation2 + $0x9c] sm:$0xf]
    %v2466 = vld [vmem:[#allocation2 + $0xa0] sm:$0xf]
    %v2467 = vld [vmem:[#allocation2 + $0xa4] sm:$0xf]
    %v2468 = vld [vmem:[#allocation2 + $0xa8] sm:$0xf]
    %v2469 = vld [vmem:[#allocation2 + $0xac] sm:$0xf]
    %v2470 = vld [vmem:[#allocation2 + $0xb0] sm:$0xf]
    %v2471 = vld [vmem:[#allocation2 + $0xb4] sm:$0xf]
    %v2472 = vld [vmem:[#allocation2 + $0xb8] sm:$0xf]
    %v2473 = vld [vmem:[#allocation2 + $0xbc] sm:$0xf]
    %v2474 = vld [vmem:[#allocation2 + $0xc0] sm:$0xf]
    %v2475 = vld [vmem:[#allocation2 + $0xc4] sm:$0xf]
    %v2476 = vld [vmem:[#allocation2 + $0xc8] sm:$0xf]
    %v2477 = vld [vmem:[#allocation2 + $0xcc] sm:$0xf]
    %v2478 = vld [vmem:[#allocation2 + $0xd0] sm:$0xf]
    %v2479 = vld [vmem:[#allocation2 + $0xd4] sm:$0xf]
    %v2480 = vld [vmem:[#allocation2 + $0xd8] sm:$0xf]
    %v2481 = vld [vmem:[#allocation2 + $0xdc] sm:$0xf]
    %v2482 = vld [vmem:[#allocation2 + $0xe0] sm:$0xf]
    %v2483 = vld [vmem:[#allocation2 + $0xe4] sm:$0xf]
    %v2484 = vld [vmem:[#allocation2 + $0xe8] sm:$0xf]
    %v2485 = vld [vmem:[#allocation2 + $0xec] sm:$0xf]
    %v2486 = vld [vmem:[#allocation2 + $0xf0] sm:$0xf]
    %v2487 = vld [vmem:[#allocation2 + $0xf4] sm:$0xf]
    %v2488 = vld [vmem:[#allocation2 + $0xf8] sm:$0xf]
    %v2489 = vld [vmem:[#allocation2 + $0xfc] sm:$0xf]
    %v2490 = vld [vmem:[%s4] sm:$0x1]
    %v2492 = vlaneseq
    %v2493 = vshrl.u32 %v2492, 7
    %v2494 = vsub.s32 0, %v2493
    %v2495 = vrot.slane %v2490, %v2494
    %v2561 = vunpack.c.l.b16 %v2426
    %v2562 = vunpack.c.l.b16 %v2427
    %v2563 = vunpack.c.l.b16 %v2428
    %v2564 = vunpack.c.l.b16 %v2429
    %v2565 = vunpack.c.l.b16 %v2430
    %v2566 = vunpack.c.l.b16 %v2431
    %v2567 = vunpack.c.l.b16 %v2432
    %v2568 = vunpack.c.l.b16 %v2433
    %v2569 = vunpack.c.l.b16 %v2434
    %v2570 = vunpack.c.l.b16 %v2435
    %v2571 = vunpack.c.l.b16 %v2436
    %v2572 = vunpack.c.l.b16 %v2437
    %v2573 = vunpack.c.l.b16 %v2438
    %v2574 = vunpack.c.l.b16 %v2439
    %v2575 = vunpack.c.l.b16 %v2440
    %v2576 = vunpack.c.l.b16 %v2441
    %v2577 = vunpack.c.l.b16 %v2442
    %v2578 = vunpack.c.l.b16 %v2443
    %v2579 = vunpack.c.l.b16 %v2444
    %v2580 = vunpack.c.l.b16 %v2445
    %v2581 = vunpack.c.l.b16 %v2446
    %v2582 = vunpack.c.l.b16 %v2447
    %v2583 = vunpack.c.l.b16 %v2448
    %v2584 = vunpack.c.l.b16 %v2449
    %v2585 = vunpack.c.l.b16 %v2450
    %v2586 = vunpack.c.l.b16 %v2451
    %v2587 = vunpack.c.l.b16 %v2452
    %v2588 = vunpack.c.l.b16 %v2453
    %v2589 = vunpack.c.l.b16 %v2454
    %v2590 = vunpack.c.l.b16 %v2455
    %v2591 = vunpack.c.l.b16 %v2456
    %v2592 = vunpack.c.l.b16 %v2457
    %v2593 = vunpack.c.l.b16 %v2458
    %v2594 = vunpack.c.l.b16 %v2459
    %v2595 = vunpack.c.l.b16 %v2460
    %v2596 = vunpack.c.l.b16 %v2461
    %v2597 = vunpack.c.l.b16 %v2462
    %v2598 = vunpack.c.l.b16 %v2463
    %v2599 = vunpack.c.l.b16 %v2464
    %v2600 = vunpack.c.l.b16 %v2465
    %v2601 = vunpack.c.l.b16 %v2466
    %v2602 = vunpack.c.l.b16 %v2467
    %v2603 = vunpack.c.l.b16 %v2468
    %v2604 = vunpack.c.l.b16 %v2469
    %v2605 = vunpack.c.l.b16 %v2470
    %v2606 = vunpack.c.l.b16 %v2471
    %v2607 = vunpack.c.l.b16 %v2472
    %v2608 = vunpack.c.l.b16 %v2473
    %v2609 = vunpack.c.l.b16 %v2474
    %v2610 = vunpack.c.l.b16 %v2475
    %v2611 = vunpack.c.l.b16 %v2476
    %v2612 = vunpack.c.l.b16 %v2477
    %v2613 = vunpack.c.l.b16 %v2478
    %v2614 = vunpack.c.l.b16 %v2479
    %v2615 = vunpack.c.l.b16 %v2480
    %v2616 = vunpack.c.l.b16 %v2481
    %v2617 = vunpack.c.l.b16 %v2482
    %v2618 = vunpack.c.l.b16 %v2483
    %v2619 = vunpack.c.l.b16 %v2484
    %v2620 = vunpack.c.l.b16 %v2485
    %v2621 = vunpack.c.l.b16 %v2486
    %v2622 = vunpack.c.l.b16 %v2487
    %v2623 = vunpack.c.l.b16 %v2488
    %v2624 = vunpack.c.l.b16 %v2489
    %v2625 = vpack.c.b16 %v2562, %v2561
    %v2626 = vpack.c.b16 %v2564, %v2563
    %v2627 = vpack.c.b16 %v2566, %v2565
    %v2628 = vpack.c.b16 %v2568, %v2567
    %v2629 = vpack.c.b16 %v2570, %v2569
    %v2630 = vpack.c.b16 %v2572, %v2571
    %v2631 = vpack.c.b16 %v2574, %v2573
    %v2632 = vpack.c.b16 %v2576, %v2575
    %v2633 = vpack.c.b16 %v2578, %v2577
    %v2634 = vpack.c.b16 %v2580, %v2579
    %v2635 = vpack.c.b16 %v2582, %v2581
    %v2636 = vpack.c.b16 %v2584, %v2583
    %v2637 = vpack.c.b16 %v2586, %v2585
    %v2638 = vpack.c.b16 %v2588, %v2587
    %v2639 = vpack.c.b16 %v2590, %v2589
    %v2640 = vpack.c.b16 %v2592, %v2591
    %v2641 = vpack.c.b16 %v2594, %v2593
    %v2642 = vpack.c.b16 %v2596, %v2595
    %v2643 = vpack.c.b16 %v2598, %v2597
    %v2644 = vpack.c.b16 %v2600, %v2599
    %v2645 = vpack.c.b16 %v2602, %v2601
    %v2646 = vpack.c.b16 %v2604, %v2603
    %v2647 = vpack.c.b16 %v2606, %v2605
    %v2648 = vpack.c.b16 %v2608, %v2607
    %v2649 = vpack.c.b16 %v2610, %v2609
    %v2650 = vpack.c.b16 %v2612, %v2611
    %v2651 = vpack.c.b16 %v2614, %v2613
    %v2652 = vpack.c.b16 %v2616, %v2615
    %v2653 = vpack.c.b16 %v2618, %v2617
    %v2654 = vpack.c.b16 %v2620, %v2619
    %v2655 = vpack.c.b16 %v2622, %v2621
    %v2656 = vpack.c.b16 %v2624, %v2623
    %2689 = vmatprep.subr.bf16.mxu0 0
    %2690 = vmatpush1.bf16.msra.mxu0 %v2625
    %2691 = vmatprep.subr.bf16.mxu0 0
    %2692 = vmatpush1.bf16.msra.mxu0 %v2626
    %2693 = vmatprep.subr.bf16.mxu0 0
    %2694 = vmatpush1.bf16.msra.mxu0 %v2627
    %2695 = vmatprep.subr.bf16.mxu0 0
    %2696 = vmatpush1.bf16.msra.mxu0 %v2628
    %2697 = vmatprep.subr.bf16.mxu0 0
    %2698 = vmatpush1.bf16.msra.mxu0 %v2629
    %2699 = vmatprep.subr.bf16.mxu0 0
    %2700 = vmatpush1.bf16.msra.mxu0 %v2630
    %2701 = vmatprep.subr.bf16.mxu0 0
    %2702 = vmatpush1.bf16.msra.mxu0 %v2631
    %2703 = vmatprep.subr.bf16.mxu0 0
    %2704 = vmatpush1.bf16.msra.mxu0 %v2632
    %2705 = vmatprep.subr.bf16.mxu0 0
    %2706 = vmatpush1.bf16.msra.mxu0 %v2633
    %2707 = vmatprep.subr.bf16.mxu0 0
    %2708 = vmatpush1.bf16.msra.mxu0 %v2634
    %2709 = vmatprep.subr.bf16.mxu0 0
    %2710 = vmatpush1.bf16.msra.mxu0 %v2635
    %2711 = vmatprep.subr.bf16.mxu0 0
    %2712 = vmatpush1.bf16.msra.mxu0 %v2636
    %2713 = vmatprep.subr.bf16.mxu0 0
    %2714 = vmatpush1.bf16.msra.mxu0 %v2637
    %2715 = vmatprep.subr.bf16.mxu0 0
    %2716 = vmatpush1.bf16.msra.mxu0 %v2638
    %2717 = vmatprep.subr.bf16.mxu0 0
    %2718 = vmatpush1.bf16.msra.mxu0 %v2639
    %2719 = vmatprep.subr.bf16.mxu0 0
    %2720 = vmatpush1.bf16.msra.mxu0 %v2640
    %2721 = vmatprep.mubr.bf16.mxu0 %v2395
    %2722 = vmatmul.mubr.bf16.gmra.mrb[0].mxu0 %v2394
    %v2723 = vpop.f32.mrb[0].mxu0
    %v2724 = vadd.f32 %v2495, %v2723
    %v2725 = vpop.f32.mrb[0].mxu0
    %v2726 = vpop.f32.mrb[0].mxu0
    %v2727 = vadd.f32 %v2495, %v2726
    %v2728 = vpop.f32.mrb[0].mxu0
    %2729 = vmatprep.mubr.bf16.mxu0 %v2399
    %2730 = vmatmul.mubr.bf16.gmra.mrb[0].mxu0 %v2398
    %v2731 = vpop.f32.mrb[0].mxu0
    %v2732 = vadd.f32 %v2495, %v2731
    %v2733 = vpop.f32.mrb[0].mxu0
    %v2734 = vpop.f32.mrb[0].mxu0
    %v2735 = vadd.f32 %v2495, %v2734
    %v2736 = vpop.f32.mrb[0].mxu0
    %2737 = vmatprep.mubr.bf16.mxu0 %v2403
    %2738 = vmatmul.mubr.bf16.gmra.mrb[0].mxu0 %v2402
    %v2739 = vpop.f32.mrb[0].mxu0
    %v2740 = vadd.f32 %v2495, %v2739
    %v2741 = vpop.f32.mrb[0].mxu0
    %v2742 = vpop.f32.mrb[0].mxu0
    %v2743 = vadd.f32 %v2495, %v2742
    %v2744 = vpop.f32.mrb[0].mxu0
    %2745 = vmatprep.mubr.bf16.mxu0 %v2407
    %2746 = vmatmul.mubr.bf16.gmra.mrb[0].mxu0 %v2406
    %v2747 = vpop.f32.mrb[0].mxu0
    %v2748 = vadd.f32 %v2495, %v2747
    %v2749 = vpop.f32.mrb[0].mxu0
    %v2750 = vpop.f32.mrb[0].mxu0
    %v2751 = vadd.f32 %v2495, %v2750
    %v2752 = vpop.f32.mrb[0].mxu0
    %2753 = vmatprep.mubr.bf16.mxu0 %v2411
    %2754 = vmatmul.mubr.bf16.gmra.mrb[0].mxu0 %v2410
    %v2755 = vpop.f32.mrb[0].mxu0
    %v2756 = vadd.f32 %v2495, %v2755
    %v2757 = vpop.f32.mrb[0].mxu0
    %v2758 = vpop.f32.mrb[0].mxu0
    %v2759 = vadd.f32 %v2495, %v2758
    %v2760 = vpop.f32.mrb[0].mxu0
    %2761 = vmatprep.mubr.bf16.mxu0 %v2415
    %2762 = vmatmul.mubr.bf16.gmra.mrb[0].mxu0 %v2414
    %v2763 = vpop.f32.mrb[0].mxu0
    %v2764 = vadd.f32 %v2495, %v2763
    %v2765 = vpop.f32.mrb[0].mxu0
    %v2766 = vpop.f32.mrb[0].mxu0
    %v2767 = vadd.f32 %v2495, %v2766
    %v2768 = vpop.f32.mrb[0].mxu0
    %2769 = vmatprep.mubr.bf16.mxu0 %v2419
    %2770 = vmatmul.mubr.bf16.gmra.mrb[0].mxu0 %v2418
    %v2771 = vpop.f32.mrb[0].mxu0
    %v2772 = vadd.f32 %v2495, %v2771
    %v2773 = vpop.f32.mrb[0].mxu0
    %v2774 = vpop.f32.mrb[0].mxu0
    %v2775 = vadd.f32 %v2495, %v2774
    %v2776 = vpop.f32.mrb[0].mxu0
    %2777 = vmatprep.mubr.bf16.mxu0 %v2423
    %2778 = vmatmul.mubr.bf16.gmra.mrb[0].mxu0 %v2422
    %v2779 = vpop.f32.mrb[0].mxu0
    %v2780 = vadd.f32 %v2495, %v2779
    %v2781 = vpop.f32.mrb[0].mxu0
    %v2782 = vpop.f32.mrb[0].mxu0
    %v2783 = vadd.f32 %v2495, %v2782
    %v2784 = vpop.f32.mrb[0].mxu0
    %2785 = vdwg.mxu0
    %2786 = vmatprep.subr.bf16.mxu0 0
    %2787 = vmatpush1.bf16.msra.mxu0 %v2641
    %2788 = vmatprep.subr.bf16.mxu0 0
    %2789 = vmatpush1.bf16.msra.mxu0 %v2642
    %2790 = vmatprep.subr.bf16.mxu0 0
    %2791 = vmatpush1.bf16.msra.mxu0 %v2643
    %2792 = vmatprep.subr.bf16.mxu0 0
    %2793 = vmatpush1.bf16.msra.mxu0 %v2644
    %2794 = vmatprep.subr.bf16.mxu0 0
    %2795 = vmatpush1.bf16.msra.mxu0 %v2645
    %2796 = vmatprep.subr.bf16.mxu0 0
    %2797 = vmatpush1.bf16.msra.mxu0 %v2646
    %2798 = vmatprep.subr.bf16.mxu0 0
    %2799 = vmatpush1.bf16.msra.mxu0 %v2647
    %2800 = vmatprep.subr.bf16.mxu0 0
    %2801 = vmatpush1.bf16.msra.mxu0 %v2648
    %2802 = vmatprep.subr.bf16.mxu0 0
    %2803 = vmatpush1.bf16.msra.mxu0 %v2649
    %2804 = vmatprep.subr.bf16.mxu0 0
    %2805 = vmatpush1.bf16.msra.mxu0 %v2650
    %2806 = vmatprep.subr.bf16.mxu0 0
    %2807 = vmatpush1.bf16.msra.mxu0 %v2651
    %2808 = vmatprep.subr.bf16.mxu0 0
    %2809 = vmatpush1.bf16.msra.mxu0 %v2652
    %2810 = vmatprep.subr.bf16.mxu0 0
    %2811 = vmatpush1.bf16.msra.mxu0 %v2653
    %2812 = vmatprep.subr.bf16.mxu0 0
    %2813 = vmatpush1.bf16.msra.mxu0 %v2654
    %2814 = vmatprep.subr.bf16.mxu0 0
    %2815 = vmatpush1.bf16.msra.mxu0 %v2655
    %2816 = vmatprep.subr.bf16.mxu0 0
    %2817 = vmatpush1.bf16.msra.mxu0 %v2656
    %2818 = vmatprep.mubr.bf16.mxu0 %v2397
    %2819 = vmatmul.mubr.bf16.gmra.mrb[0].mxu0 %v2396
    %v2820 = vpop.f32.mrb[0].mxu0
    %v2821 = vadd.f32 %v2724, %v2820
    %v2822 = vpop.f32.mrb[0].mxu0
    %v2823 = vpop.f32.mrb[0].mxu0
    %v2824 = vadd.f32 %v2727, %v2823
    %v2825 = vpop.f32.mrb[0].mxu0
    %2826 = vmatprep.mubr.bf16.mxu0 %v2401
    %2827 = vmatmul.mubr.bf16.gmra.mrb[0].mxu0 %v2400
    %v2828 = vpop.f32.mrb[0].mxu0
    %v2829 = vadd.f32 %v2732, %v2828
    %v2830 = vpop.f32.mrb[0].mxu0
    %v2831 = vpop.f32.mrb[0].mxu0
    %v2832 = vadd.f32 %v2735, %v2831
    %v2833 = vpop.f32.mrb[0].mxu0
    %2834 = vmatprep.mubr.bf16.mxu0 %v2405
    %2835 = vmatmul.mubr.bf16.gmra.mrb[0].mxu0 %v2404
    %v2836 = vpop.f32.mrb[0].mxu0
    %v2837 = vadd.f32 %v2740, %v2836
    %v2838 = vpop.f32.mrb[0].mxu0
    %v2839 = vpop.f32.mrb[0].mxu0
    %v2840 = vadd.f32 %v2743, %v2839
    %v2841 = vpop.f32.mrb[0].mxu0
    %2842 = vmatprep.mubr.bf16.mxu0 %v2409
    %2843 = vmatmul.mubr.bf16.gmra.mrb[0].mxu0 %v2408
    %v2844 = vpop.f32.mrb[0].mxu0
    %v2845 = vadd.f32 %v2748, %v2844
    %v2846 = vpop.f32.mrb[0].mxu0
    %v2847 = vpop.f32.mrb[0].mxu0
    %v2848 = vadd.f32 %v2751, %v2847
    %v2849 = vpop.f32.mrb[0].mxu0
    %2850 = vmatprep.mubr.bf16.mxu0 %v2413
    %2851 = vmatmul.mubr.bf16.gmra.mrb[0].mxu0 %v2412
    %v2852 = vpop.f32.mrb[0].mxu0
    %v2853 = vadd.f32 %v2756, %v2852
    %v2854 = vpop.f32.mrb[0].mxu0
    %v2855 = vpop.f32.mrb[0].mxu0
    %v2856 = vadd.f32 %v2759, %v2855
    %v2857 = vpop.f32.mrb[0].mxu0
    %2858 = vmatprep.mubr.bf16.mxu0 %v2417
    %2859 = vmatmul.mubr.bf16.gmra.mrb[0].mxu0 %v2416
    %v2860 = vpop.f32.mrb[0].mxu0
    %v2861 = vadd.f32 %v2764, %v2860
    %v2862 = vpop.f32.mrb[0].mxu0
    %v2863 = vpop.f32.mrb[0].mxu0
    %v2864 = vadd.f32 %v2767, %v2863
    %v2865 = vpop.f32.mrb[0].mxu0
    %2866 = vmatprep.mubr.bf16.mxu0 %v2421
    %2867 = vmatmul.mubr.bf16.gmra.mrb[0].mxu0 %v2420
    %v2868 = vpop.f32.mrb[0].mxu0
    %v2869 = vadd.f32 %v2772, %v2868
    %v2870 = vpop.f32.mrb[0].mxu0
    %v2871 = vpop.f32.mrb[0].mxu0
    %v2872 = vadd.f32 %v2775, %v2871
    %v2873 = vpop.f32.mrb[0].mxu0
    %2874 = vmatprep.mubr.bf16.mxu0 %v2425
    %2875 = vmatmul.mubr.bf16.gmra.mrb[0].mxu0 %v2424
    %v2876 = vpop.f32.mrb[0].mxu0
    %v2877 = vadd.f32 %v2780, %v2876
    %v2878 = vpop.f32.mrb[0].mxu0
    %v2879 = vpop.f32.mrb[0].mxu0
    %v2880 = vadd.f32 %v2783, %v2879
    %v2881 = vpop.f32.mrb[0].mxu0
    %2882 = vdwg.mxu0
    %2883 = vst [vmem:[%s5] sm:$0xff] %v2821
    %2884 = vst [vmem:[%s5 + $0x8] sm:$0xff] %v2824
    %2885 = vst [vmem:[%s5 + $0x10] sm:$0xff] %v2829
    %2886 = vst [vmem:[%s5 + $0x18] sm:$0xff] %v2832
    %2887 = vst [vmem:[%s5 + $0x20] sm:$0xff] %v2837
    %2888 = vst [vmem:[%s5 + $0x28] sm:$0xff] %v2840
    %2889 = vst [vmem:[%s5 + $0x30] sm:$0xff] %v2845
    %2890 = vst [vmem:[%s5 + $0x38] sm:$0xff] %v2848
    %2891 = vst [vmem:[%s5 + $0x40] sm:$0xff] %v2853
    %2892 = vst [vmem:[%s5 + $0x48] sm:$0xff] %v2856
    %2893 = vst [vmem:[%s5 + $0x50] sm:$0xff] %v2861
    %2894 = vst [vmem:[%s5 + $0x58] sm:$0xff] %v2864
    %2895 = vst [vmem:[%s5 + $0x60] sm:$0xff] %v2869
    %2896 = vst [vmem:[%s5 + $0x68] sm:$0xff] %v2872
    %2897 = vst [vmem:[%s5 + $0x70] sm:$0xff] %v2877
    %2898 = vst [vmem:[%s5 + $0x78] sm:$0xff] %v2880
    // Predicated region
    $region26: #{neural_net_forward.1} parent=1 // pred_check
      _
    $region27: #{neural_net_forward.1} parent=1 // pred_check_branch
      %2900 = sbr.rel (0) target = $region29
    $region28: #{neural_net_forward.1} parent=1 // pred_region
      _
    $region29: #{neural_net_forward.1} parent=1 // pred_fallthru
      _
    // Predicated region
    $region30: #{neural_net_forward.1} parent=1 // pred_check
      _
    $region31: #{neural_net_forward.1} parent=1 // pred_check_branch
      %2902 = sbr.rel (0) target = $region33
    $region32: #{neural_net_forward.1} parent=1 // pred_region
      _
    $region33: #{neural_net_forward.1} parent=1 // pred_fallthru
      _
    %2903 = vsyncpa [#allocation3], 1

</llo_original>
